<compile_context>
chip_gen: v7x
topology: tpu7x:2x2x1
jax: 0.10.0
libtpu: 0.0.40
codegen_flags: <defaults>
</compile_context>

<pallas_src>
import functools

import jax
import jax.numpy as jnp
from jax.experimental import pallas as pl
from jax.experimental.pallas import tpu as pltpu


def _round_up(v, m):
    return (v + m - 1) // m * m


def _im2patches_kernel(x_ref, o_ref, *, rows_per_block, C, ps, px):
    """Rearranges one image slab into one tile of patch rows.

    x_ref: (1, C, rows_per_block*ps, px, ps)  image slab (W pre-split into (px, ps))
    o_ref: (1, rows_per_block*px, C*ps*ps)    patch tile, lane-dense last dim
    """
    for rr in range(rows_per_block):          # static -> fully unrolled
        for c in range(C):
            for yy in range(ps):
                blk = x_ref[0, c, rr * ps + yy, :, :]          # (px, ps)
                col = (c * ps + yy) * ps                       # = c*ps*ps + yy*ps
                o_ref[0, rr * px:(rr + 1) * px, col:col + ps] = blk


def _pick_rows_per_block(py, px, C, ps, itemsize,
                         vmem_budget=2 * 1024 * 1024, max_unroll=256):
    """Largest patch-row tile that (a) tiles py exactly, (b) keeps the output
    block (8, *)-legal, (c) fits the VMEM budget, (d) bounds the unroll."""
    N = py * px

    def legal(tr):
        return py % tr == 0 and ((tr * px) % 8 == 0 or tr * px == N)

    def block_bytes(tr):
        inb = C * tr * ps * _round_up(px, 8) * _round_up(ps, 128) * itemsize
        outb = _round_up(tr * px, 8) * _round_up(C * ps * ps, 128) * itemsize
        return inb + outb

    for tr in range(py, 0, -1):
        if legal(tr) and tr * C * ps <= max_unroll and block_bytes(tr) <= vmem_budget:
            return tr
    for tr in range(1, py + 1):               # fallback: smallest legal tile
        if legal(tr):
            return tr
    return py


def im2patches(x, patch_size):
    """x: (B, C, H, W) -> patches (B, (H//ps)*(W//ps), C*ps*ps)."""
    B, C, H, W = x.shape
    ps = int(patch_size)
    assert H % ps == 0 and W % ps == 0, "H and W must be multiples of patch_size"
    py, px = H // ps, W // ps
    N, K = py * px, C * ps * ps
    itemsize = jnp.dtype(x.dtype).itemsize

    # Free reshape (splits only the contiguous last dim): no HBM copy.
    x5 = x.reshape(B, C, H, px, ps)

    tr = _pick_rows_per_block(py, px, C, ps, itemsize)
    grid = (B, py // tr)

    in_block_bytes = C * tr * ps * _round_up(px, 8) * _round_up(ps, 128) * itemsize
    out_block_bytes = _round_up(tr * px, 8) * _round_up(K, 128) * itemsize
    vmem_limit = int(min(max(2 * (in_block_bytes + out_block_bytes) + (2 << 20),
                             16 << 20), 64 << 20))

    kernel = functools.partial(_im2patches_kernel,
                               rows_per_block=tr, C=C, ps=ps, px=px)

    return pl.pallas_call(
        kernel,
        out_shape=jax.ShapeDtypeStruct((B, N, K), x.dtype),
        grid=grid,
        in_specs=[pl.BlockSpec((1, C, tr * ps, px, ps),
                               lambda b, r: (b, 0, r, 0, 0))],
        out_specs=pl.BlockSpec((1, tr * px, K), lambda b, r: (b, r, 0)),
        compiler_params=pltpu.CompilerParams(
            dimension_semantics=("parallel", "parallel"),
            vmem_limit_bytes=vmem_limit),
        cost_estimate=pl.CostEstimate(
            flops=0, transcendentals=0,
            bytes_accessed=2 * B * C * H * W * itemsize),
    )(x5)


def im2patches_ref(x, patch_size):
    """Pure-JAX reference: 'b c (py yy) (px xx) -> b (py px) (c yy xx)'."""
    B, C, H, W = x.shape
    ps = patch_size
    py, px = H // ps, W // ps
    p = x.reshape(B, C, py, ps, px, ps)
    p = p.transpose(0, 2, 4, 1, 3, 5)
    return p.reshape(B, py * px, C * ps * ps)


if __name__ == "__main__":
    patch_size = 4
    B, C, H, W = 2, 3, 32, 32          # small config: py = px = 8, N = 64, K = 48

    key = jax.random.PRNGKey(0)
    x = jax.random.normal(key, (B, C, H, W), dtype=jnp.float32)

    out = im2patches(x, patch_size)
    out = jax.block_until_ready(out)

    ref = im2patches_ref(x, patch_size)
    assert out.shape == (B, (H // patch_size) * (W // patch_size),
                         C * patch_size * patch_size), out.shape
    assert bool(jnp.all(out == ref)), "Pallas Im2Patches mismatch vs reference"

    print("KERNEL_OK")
</pallas_src>

<mosaic_0001>
module attributes {stable_mosaic.version = 11 : i64} {
  func.func @_im2patches_kernel(%arg0: i32, %arg1: i32, %arg2: memref<1x3x32x8x4xf32, #tpu.memory_space<vmem>>, %arg3: memref<1x64x48xf32, #tpu.memory_space<vmem>>) attributes {dimension_semantics = [#tpu.dimension_semantics<parallel>, #tpu.dimension_semantics<parallel>], iteration_bounds = array<i64: 2, 1>, scalar_prefetch = 0 : i64, scratch_operands = 0 : i64, tpu.core_type = #tpu.core_type<tc>, window_params = [{transform_indices = @transform_0, window_bounds = array<i64: 1, 3, 32, 8, 4>}, {transform_indices = @transform_1, window_bounds = array<i64: 1, 64, 48>}]} {
    %c0 = arith.constant 0 : index
    %c0_0 = arith.constant 0 : index
    %c0_1 = arith.constant 0 : index
    %c0_2 = arith.constant 0 : index
    %c0_3 = arith.constant 0 : index
    %0 = vector.load %arg2[%c0, %c0_0, %c0_1, %c0_2, %c0_3] : memref<1x3x32x8x4xf32, #tpu.memory_space<vmem>>, vector<1x1x1x8x4xf32>
    %1 = vector.shape_cast %0 : vector<1x1x1x8x4xf32> to vector<8x4xf32>
    %c0_4 = arith.constant 0 : index
    %c0_5 = arith.constant 0 : index
    %c0_6 = arith.constant 0 : index
    %2 = vector.load %arg3[%c0_4, %c0_5, %c0_6] : memref<1x64x48xf32, #tpu.memory_space<vmem>>, vector<1x8x4xf32>
    %3 = vector.shape_cast %2 : vector<1x8x4xf32> to vector<8x4xf32>
    %4 = vector.shape_cast %1 : vector<8x4xf32> to vector<1x8x4xf32>
    tpu.vector_store %arg3[%c0_4, %c0_5, %c0_6], %4 {strides = array<i32>} : memref<1x64x48xf32, #tpu.memory_space<vmem>>, vector<1x8x4xf32>,
    %c0_7 = arith.constant 0 : index
    %c0_8 = arith.constant 0 : index
    %c1 = arith.constant 1 : index
    %c0_9 = arith.constant 0 : index
    %c0_10 = arith.constant 0 : index
    %5 = vector.load %arg2[%c0_7, %c0_8, %c1, %c0_9, %c0_10] : memref<1x3x32x8x4xf32, #tpu.memory_space<vmem>>, vector<1x1x1x8x4xf32>
    %6 = vector.shape_cast %5 : vector<1x1x1x8x4xf32> to vector<8x4xf32>
    %c0_11 = arith.constant 0 : index
    %c0_12 = arith.constant 0 : index
    %c4 = arith.constant 4 : index
    %7 = vector.load %arg3[%c0_11, %c0_12, %c4] : memref<1x64x48xf32, #tpu.memory_space<vmem>>, vector<1x8x4xf32>
    %8 = vector.shape_cast %7 : vector<1x8x4xf32> to vector<8x4xf32>
    %9 = vector.shape_cast %6 : vector<8x4xf32> to vector<1x8x4xf32>
    tpu.vector_store %arg3[%c0_11, %c0_12, %c4], %9 {strides = array<i32>} : memref<1x64x48xf32, #tpu.memory_space<vmem>>, vector<1x8x4xf32>,
    %c0_13 = arith.constant 0 : index
    %c0_14 = arith.constant 0 : index
    %c2 = arith.constant 2 : index
    %c0_15 = arith.constant 0 : index
    %c0_16 = arith.constant 0 : index
    %10 = vector.load %arg2[%c0_13, %c0_14, %c2, %c0_15, %c0_16] : memref<1x3x32x8x4xf32, #tpu.memory_space<vmem>>, vector<1x1x1x8x4xf32>
    %11 = vector.shape_cast %10 : vector<1x1x1x8x4xf32> to vector<8x4xf32>
    %c0_17 = arith.constant 0 : index
    %c0_18 = arith.constant 0 : index
    %c8 = arith.constant 8 : index
    %12 = vector.load %arg3[%c0_17, %c0_18, %c8] : memref<1x64x48xf32, #tpu.memory_space<vmem>>, vector<1x8x4xf32>
    %13 = vector.shape_cast %12 : vector<1x8x4xf32> to vector<8x4xf32>
    %14 = vector.shape_cast %11 : vector<8x4xf32> to vector<1x8x4xf32>
    tpu.vector_store %arg3[%c0_17, %c0_18, %c8], %14 {strides = array<i32>} : memref<1x64x48xf32, #tpu.memory_space<vmem>>, vector<1x8x4xf32>,
    %c0_19 = arith.constant 0 : index
    %c0_20 = arith.constant 0 : index
    %c3 = arith.constant 3 : index
    %c0_21 = arith.constant 0 : index
    %c0_22 = arith.constant 0 : index
    %15 = vector.load %arg2[%c0_19, %c0_20, %c3, %c0_21, %c0_22] : memref<1x3x32x8x4xf32, #tpu.memory_space<vmem>>, vector<1x1x1x8x4xf32>
    %16 = vector.shape_cast %15 : vector<1x1x1x8x4xf32> to vector<8x4xf32>
    %c0_23 = arith.constant 0 : index
    %c0_24 = arith.constant 0 : index
    %c12 = arith.constant 12 : index
    %17 = vector.load %arg3[%c0_23, %c0_24, %c12] : memref<1x64x48xf32, #tpu.memory_space<vmem>>, vector<1x8x4xf32>
    %18 = vector.shape_cast %17 : vector<1x8x4xf32> to vector<8x4xf32>
    %19 = vector.shape_cast %16 : vector<8x4xf32> to vector<1x8x4xf32>
    tpu.vector_store %arg3[%c0_23, %c0_24, %c12], %19 {strides = array<i32>} : memref<1x64x48xf32, #tpu.memory_space<vmem>>, vector<1x8x4xf32>,
    %c0_25 = arith.constant 0 : index
    %c1_26 = arith.constant 1 : index
    %c0_27 = arith.constant 0 : index
    %c0_28 = arith.constant 0 : index
    %c0_29 = arith.constant 0 : index
    %20 = vector.load %arg2[%c0_25, %c1_26, %c0_27, %c0_28, %c0_29] : memref<1x3x32x8x4xf32, #tpu.memory_space<vmem>>, vector<1x1x1x8x4xf32>
    %21 = vector.shape_cast %20 : vector<1x1x1x8x4xf32> to vector<8x4xf32>
    %c0_30 = arith.constant 0 : index
    %c0_31 = arith.constant 0 : index
    %c16 = arith.constant 16 : index
    %22 = vector.load %arg3[%c0_30, %c0_31, %c16] : memref<1x64x48xf32, #tpu.memory_space<vmem>>, vector<1x8x4xf32>
    %23 = vector.shape_cast %22 : vector<1x8x4xf32> to vector<8x4xf32>
    %24 = vector.shape_cast %21 : vector<8x4xf32> to vector<1x8x4xf32>
    tpu.vector_store %arg3[%c0_30, %c0_31, %c16], %24 {strides = array<i32>} : memref<1x64x48xf32, #tpu.memory_space<vmem>>, vector<1x8x4xf32>,
    %c0_32 = arith.constant 0 : index
    %c1_33 = arith.constant 1 : index
    %c1_34 = arith.constant 1 : index
    %c0_35 = arith.constant 0 : index
    %c0_36 = arith.constant 0 : index
    %25 = vector.load %arg2[%c0_32, %c1_33, %c1_34, %c0_35, %c0_36] : memref<1x3x32x8x4xf32, #tpu.memory_space<vmem>>, vector<1x1x1x8x4xf32>
    %26 = vector.shape_cast %25 : vector<1x1x1x8x4xf32> to vector<8x4xf32>
    %c0_37 = arith.constant 0 : index
    %c0_38 = arith.constant 0 : index
    %c20 = arith.constant 20 : index
    %27 = vector.load %arg3[%c0_37, %c0_38, %c20] : memref<1x64x48xf32, #tpu.memory_space<vmem>>, vector<1x8x4xf32>
    %28 = vector.shape_cast %27 : vector<1x8x4xf32> to vector<8x4xf32>
    %29 = vector.shape_cast %26 : vector<8x4xf32> to vector<1x8x4xf32>
    tpu.vector_store %arg3[%c0_37, %c0_38, %c20], %29 {strides = array<i32>} : memref<1x64x48xf32, #tpu.memory_space<vmem>>, vector<1x8x4xf32>,
    %c0_39 = arith.constant 0 : index
    %c1_40 = arith.constant 1 : index
    %c2_41 = arith.constant 2 : index
    %c0_42 = arith.constant 0 : index
    %c0_43 = arith.constant 0 : index
    %30 = vector.load %arg2[%c0_39, %c1_40, %c2_41, %c0_42, %c0_43] : memref<1x3x32x8x4xf32, #tpu.memory_space<vmem>>, vector<1x1x1x8x4xf32>
    %31 = vector.shape_cast %30 : vector<1x1x1x8x4xf32> to vector<8x4xf32>
    %c0_44 = arith.constant 0 : index
    %c0_45 = arith.constant 0 : index
    %c24 = arith.constant 24 : index
    %32 = vector.load %arg3[%c0_44, %c0_45, %c24] : memref<1x64x48xf32, #tpu.memory_space<vmem>>, vector<1x8x4xf32>
    %33 = vector.shape_cast %32 : vector<1x8x4xf32> to vector<8x4xf32>
    %34 = vector.shape_cast %31 : vector<8x4xf32> to vector<1x8x4xf32>
    tpu.vector_store %arg3[%c0_44, %c0_45, %c24], %34 {strides = array<i32>} : memref<1x64x48xf32, #tpu.memory_space<vmem>>, vector<1x8x4xf32>,
    %c0_46 = arith.constant 0 : index
    %c1_47 = arith.constant 1 : index
    %c3_48 = arith.constant 3 : index
    %c0_49 = arith.constant 0 : index
    %c0_50 = arith.constant 0 : index
    %35 = vector.load %arg2[%c0_46, %c1_47, %c3_48, %c0_49, %c0_50] : memref<1x3x32x8x4xf32, #tpu.memory_space<vmem>>, vector<1x1x1x8x4xf32>
    %36 = vector.shape_cast %35 : vector<1x1x1x8x4xf32> to vector<8x4xf32>
    %c0_51 = arith.constant 0 : index
    %c0_52 = arith.constant 0 : index
    %c28 = arith.constant 28 : index
    %37 = vector.load %arg3[%c0_51, %c0_52, %c28] : memref<1x64x48xf32, #tpu.memory_space<vmem>>, vector<1x8x4xf32>
    %38 = vector.shape_cast %37 : vector<1x8x4xf32> to vector<8x4xf32>
    %39 = vector.shape_cast %36 : vector<8x4xf32> to vector<1x8x4xf32>
    tpu.vector_store %arg3[%c0_51, %c0_52, %c28], %39 {strides = array<i32>} : memref<1x64x48xf32, #tpu.memory_space<vmem>>, vector<1x8x4xf32>,
    %c0_53 = arith.constant 0 : index
    %c2_54 = arith.constant 2 : index
    %c0_55 = arith.constant 0 : index
    %c0_56 = arith.constant 0 : index
    %c0_57 = arith.constant 0 : index
    %40 = vector.load %arg2[%c0_53, %c2_54, %c0_55, %c0_56, %c0_57] : memref<1x3x32x8x4xf32, #tpu.memory_space<vmem>>, vector<1x1x1x8x4xf32>
    %41 = vector.shape_cast %40 : vector<1x1x1x8x4xf32> to vector<8x4xf32>
    %c0_58 = arith.constant 0 : index
    %c0_59 = arith.constant 0 : index
    %c32 = arith.constant 32 : index
    %42 = vector.load %arg3[%c0_58, %c0_59, %c32] : memref<1x64x48xf32, #tpu.memory_space<vmem>>, vector<1x8x4xf32>
    %43 = vector.shape_cast %42 : vector<1x8x4xf32> to vector<8x4xf32>
    %44 = vector.shape_cast %41 : vector<8x4xf32> to vector<1x8x4xf32>
    tpu.vector_store %arg3[%c0_58, %c0_59, %c32], %44 {strides = array<i32>} : memref<1x64x48xf32, #tpu.memory_space<vmem>>, vector<1x8x4xf32>,
    %c0_60 = arith.constant 0 : index
    %c2_61 = arith.constant 2 : index
    %c1_62 = arith.constant 1 : index
    %c0_63 = arith.constant 0 : index
    %c0_64 = arith.constant 0 : index
    %45 = vector.load %arg2[%c0_60, %c2_61, %c1_62, %c0_63, %c0_64] : memref<1x3x32x8x4xf32, #tpu.memory_space<vmem>>, vector<1x1x1x8x4xf32>
    %46 = vector.shape_cast %45 : vector<1x1x1x8x4xf32> to vector<8x4xf32>
    %c0_65 = arith.constant 0 : index
    %c0_66 = arith.constant 0 : index
    %c36 = arith.constant 36 : index
    %47 = vector.load %arg3[%c0_65, %c0_66, %c36] : memref<1x64x48xf32, #tpu.memory_space<vmem>>, vector<1x8x4xf32>
    %48 = vector.shape_cast %47 : vector<1x8x4xf32> to vector<8x4xf32>
    %49 = vector.shape_cast %46 : vector<8x4xf32> to vector<1x8x4xf32>
    tpu.vector_store %arg3[%c0_65, %c0_66, %c36], %49 {strides = array<i32>} : memref<1x64x48xf32, #tpu.memory_space<vmem>>, vector<1x8x4xf32>,
    %c0_67 = arith.constant 0 : index
    %c2_68 = arith.constant 2 : index
    %c2_69 = arith.constant 2 : index
    %c0_70 = arith.constant 0 : index
    %c0_71 = arith.constant 0 : index
    %50 = vector.load %arg2[%c0_67, %c2_68, %c2_69, %c0_70, %c0_71] : memref<1x3x32x8x4xf32, #tpu.memory_space<vmem>>, vector<1x1x1x8x4xf32>
    %51 = vector.shape_cast %50 : vector<1x1x1x8x4xf32> to vector<8x4xf32>
    %c0_72 = arith.constant 0 : index
    %c0_73 = arith.constant 0 : index
    %c40 = arith.constant 40 : index
    %52 = vector.load %arg3[%c0_72, %c0_73, %c40] : memref<1x64x48xf32, #tpu.memory_space<vmem>>, vector<1x8x4xf32>
    %53 = vector.shape_cast %52 : vector<1x8x4xf32> to vector<8x4xf32>
    %54 = vector.shape_cast %51 : vector<8x4xf32> to vector<1x8x4xf32>
    tpu.vector_store %arg3[%c0_72, %c0_73, %c40], %54 {strides = array<i32>} : memref<1x64x48xf32, #tpu.memory_space<vmem>>, vector<1x8x4xf32>,
    %c0_74 = arith.constant 0 : index
    %c2_75 = arith.constant 2 : index
    %c3_76 = arith.constant 3 : index
    %c0_77 = arith.constant 0 : index
    %c0_78 = arith.constant 0 : index
    %55 = vector.load %arg2[%c0_74, %c2_75, %c3_76, %c0_77, %c0_78] : memref<1x3x32x8x4xf32, #tpu.memory_space<vmem>>, vector<1x1x1x8x4xf32>
    %56 = vector.shape_cast %55 : vector<1x1x1x8x4xf32> to vector<8x4xf32>
    %c0_79 = arith.constant 0 : index
    %c0_80 = arith.constant 0 : index
    %c44 = arith.constant 44 : index
    %57 = vector.load %arg3[%c0_79, %c0_80, %c44] : memref<1x64x48xf32, #tpu.memory_space<vmem>>, vector<1x8x4xf32>
    %58 = vector.shape_cast %57 : vector<1x8x4xf32> to vector<8x4xf32>
    %59 = vector.shape_cast %56 : vector<8x4xf32> to vector<1x8x4xf32>
    tpu.vector_store %arg3[%c0_79, %c0_80, %c44], %59 {strides = array<i32>} : memref<1x64x48xf32, #tpu.memory_space<vmem>>, vector<1x8x4xf32>,
    %c0_81 = arith.constant 0 : index
    %c0_82 = arith.constant 0 : index
    %c4_83 = arith.constant 4 : index
    %c0_84 = arith.constant 0 : index
    %c0_85 = arith.constant 0 : index
    %60 = vector.load %arg2[%c0_81, %c0_82, %c4_83, %c0_84, %c0_85] : memref<1x3x32x8x4xf32, #tpu.memory_space<vmem>>, vector<1x1x1x8x4xf32>
    %61 = vector.shape_cast %60 : vector<1x1x1x8x4xf32> to vector<8x4xf32>
    %c0_86 = arith.constant 0 : index
    %c8_87 = arith.constant 8 : index
    %c0_88 = arith.constant 0 : index
    %62 = vector.load %arg3[%c0_86, %c8_87, %c0_88] : memref<1x64x48xf32, #tpu.memory_space<vmem>>, vector<1x8x4xf32>
    %63 = vector.shape_cast %62 : vector<1x8x4xf32> to vector<8x4xf32>
    %64 = vector.shape_cast %61 : vector<8x4xf32> to vector<1x8x4xf32>
    tpu.vector_store %arg3[%c0_86, %c8_87, %c0_88], %64 {strides = array<i32>} : memref<1x64x48xf32, #tpu.memory_space<vmem>>, vector<1x8x4xf32>,
    %c0_89 = arith.constant 0 : index
    %c0_90 = arith.constant 0 : index
    %c5 = arith.constant 5 : index
    %c0_91 = arith.constant 0 : index
    %c0_92 = arith.constant 0 : index
    %65 = vector.load %arg2[%c0_89, %c0_90, %c5, %c0_91, %c0_92] : memref<1x3x32x8x4xf32, #tpu.memory_space<vmem>>, vector<1x1x1x8x4xf32>
    %66 = vector.shape_cast %65 : vector<1x1x1x8x4xf32> to vector<8x4xf32>
    %c0_93 = arith.constant 0 : index
    %c8_94 = arith.constant 8 : index
    %c4_95 = arith.constant 4 : index
    %67 = vector.load %arg3[%c0_93, %c8_94, %c4_95] : memref<1x64x48xf32, #tpu.memory_space<vmem>>, vector<1x8x4xf32>
    %68 = vector.shape_cast %67 : vector<1x8x4xf32> to vector<8x4xf32>
    %69 = vector.shape_cast %66 : vector<8x4xf32> to vector<1x8x4xf32>
    tpu.vector_store %arg3[%c0_93, %c8_94, %c4_95], %69 {strides = array<i32>} : memref<1x64x48xf32, #tpu.memory_space<vmem>>, vector<1x8x4xf32>,
    %c0_96 = arith.constant 0 : index
    %c0_97 = arith.constant 0 : index
    %c6 = arith.constant 6 : index
    %c0_98 = arith.constant 0 : index
    %c0_99 = arith.constant 0 : index
    %70 = vector.load %arg2[%c0_96, %c0_97, %c6, %c0_98, %c0_99] : memref<1x3x32x8x4xf32, #tpu.memory_space<vmem>>, vector<1x1x1x8x4xf32>
    %71 = vector.shape_cast %70 : vector<1x1x1x8x4xf32> to vector<8x4xf32>
    %c0_100 = arith.constant 0 : index
    %c8_101 = arith.constant 8 : index
    %c8_102 = arith.constant 8 : index
    %72 = vector.load %arg3[%c0_100, %c8_101, %c8_102] : memref<1x64x48xf32, #tpu.memory_space<vmem>>, vector<1x8x4xf32>
    %73 = vector.shape_cast %72 : vector<1x8x4xf32> to vector<8x4xf32>
    %74 = vector.shape_cast %71 : vector<8x4xf32> to vector<1x8x4xf32>
    tpu.vector_store %arg3[%c0_100, %c8_101, %c8_102], %74 {strides = array<i32>} : memref<1x64x48xf32, #tpu.memory_space<vmem>>, vector<1x8x4xf32>,
    %c0_103 = arith.constant 0 : index
    %c0_104 = arith.constant 0 : index
    %c7 = arith.constant 7 : index
    %c0_105 = arith.constant 0 : index
    %c0_106 = arith.constant 0 : index
    %75 = vector.load %arg2[%c0_103, %c0_104, %c7, %c0_105, %c0_106] : memref<1x3x32x8x4xf32, #tpu.memory_space<vmem>>, vector<1x1x1x8x4xf32>
    %76 = vector.shape_cast %75 : vector<1x1x1x8x4xf32> to vector<8x4xf32>
    %c0_107 = arith.constant 0 : index
    %c8_108 = arith.constant 8 : index
    %c12_109 = arith.constant 12 : index
    %77 = vector.load %arg3[%c0_107, %c8_108, %c12_109] : memref<1x64x48xf32, #tpu.memory_space<vmem>>, vector<1x8x4xf32>
    %78 = vector.shape_cast %77 : vector<1x8x4xf32> to vector<8x4xf32>
    %79 = vector.shape_cast %76 : vector<8x4xf32> to vector<1x8x4xf32>
    tpu.vector_store %arg3[%c0_107, %c8_108, %c12_109], %79 {strides = array<i32>} : memref<1x64x48xf32, #tpu.memory_space<vmem>>, vector<1x8x4xf32>,
    %c0_110 = arith.constant 0 : index
    %c1_111 = arith.constant 1 : index
    %c4_112 = arith.constant 4 : index
    %c0_113 = arith.constant 0 : index
    %c0_114 = arith.constant 0 : index
    %80 = vector.load %arg2[%c0_110, %c1_111, %c4_112, %c0_113, %c0_114] : memref<1x3x32x8x4xf32, #tpu.memory_space<vmem>>, vector<1x1x1x8x4xf32>
    %81 = vector.shape_cast %80 : vector<1x1x1x8x4xf32> to vector<8x4xf32>
    %c0_115 = arith.constant 0 : index
    %c8_116 = arith.constant 8 : index
    %c16_117 = arith.constant 16 : index
    %82 = vector.load %arg3[%c0_115, %c8_116, %c16_117] : memref<1x64x48xf32, #tpu.memory_space<vmem>>, vector<1x8x4xf32>
    %83 = vector.shape_cast %82 : vector<1x8x4xf32> to vector<8x4xf32>
    %84 = vector.shape_cast %81 : vector<8x4xf32> to vector<1x8x4xf32>
    tpu.vector_store %arg3[%c0_115, %c8_116, %c16_117], %84 {strides = array<i32>} : memref<1x64x48xf32, #tpu.memory_space<vmem>>, vector<1x8x4xf32>,
    %c0_118 = arith.constant 0 : index
    %c1_119 = arith.constant 1 : index
    %c5_120 = arith.constant 5 : index
    %c0_121 = arith.constant 0 : index
    %c0_122 = arith.constant 0 : index
    %85 = vector.load %arg2[%c0_118, %c1_119, %c5_120, %c0_121, %c0_122] : memref<1x3x32x8x4xf32, #tpu.memory_space<vmem>>, vector<1x1x1x8x4xf32>
    %86 = vector.shape_cast %85 : vector<1x1x1x8x4xf32> to vector<8x4xf32>
    %c0_123 = arith.constant 0 : index
    %c8_124 = arith.constant 8 : index
    %c20_125 = arith.constant 20 : index
    %87 = vector.load %arg3[%c0_123, %c8_124, %c20_125] : memref<1x64x48xf32, #tpu.memory_space<vmem>>, vector<1x8x4xf32>
    %88 = vector.shape_cast %87 : vector<1x8x4xf32> to vector<8x4xf32>
    %89 = vector.shape_cast %86 : vector<8x4xf32> to vector<1x8x4xf32>
    tpu.vector_store %arg3[%c0_123, %c8_124, %c20_125], %89 {strides = array<i32>} : memref<1x64x48xf32, #tpu.memory_space<vmem>>, vector<1x8x4xf32>,
    %c0_126 = arith.constant 0 : index
    %c1_127 = arith.constant 1 : index
    %c6_128 = arith.constant 6 : index
    %c0_129 = arith.constant 0 : index
    %c0_130 = arith.constant 0 : index
    %90 = vector.load %arg2[%c0_126, %c1_127, %c6_128, %c0_129, %c0_130] : memref<1x3x32x8x4xf32, #tpu.memory_space<vmem>>, vector<1x1x1x8x4xf32>
    %91 = vector.shape_cast %90 : vector<1x1x1x8x4xf32> to vector<8x4xf32>
    %c0_131 = arith.constant 0 : index
    %c8_132 = arith.constant 8 : index
    %c24_133 = arith.constant 24 : index
    %92 = vector.load %arg3[%c0_131, %c8_132, %c24_133] : memref<1x64x48xf32, #tpu.memory_space<vmem>>, vector<1x8x4xf32>
    %93 = vector.shape_cast %92 : vector<1x8x4xf32> to vector<8x4xf32>
    %94 = vector.shape_cast %91 : vector<8x4xf32> to vector<1x8x4xf32>
    tpu.vector_store %arg3[%c0_131, %c8_132, %c24_133], %94 {strides = array<i32>} : memref<1x64x48xf32, #tpu.memory_space<vmem>>, vector<1x8x4xf32>,
    %c0_134 = arith.constant 0 : index
    %c1_135 = arith.constant 1 : index
    %c7_136 = arith.constant 7 : index
    %c0_137 = arith.constant 0 : index
    %c0_138 = arith.constant 0 : index
    %95 = vector.load %arg2[%c0_134, %c1_135, %c7_136, %c0_137, %c0_138] : memref<1x3x32x8x4xf32, #tpu.memory_space<vmem>>, vector<1x1x1x8x4xf32>
    %96 = vector.shape_cast %95 : vector<1x1x1x8x4xf32> to vector<8x4xf32>
    %c0_139 = arith.constant 0 : index
    %c8_140 = arith.constant 8 : index
    %c28_141 = arith.constant 28 : index
    %97 = vector.load %arg3[%c0_139, %c8_140, %c28_141] : memref<1x64x48xf32, #tpu.memory_space<vmem>>, vector<1x8x4xf32>
    %98 = vector.shape_cast %97 : vector<1x8x4xf32> to vector<8x4xf32>
    %99 = vector.shape_cast %96 : vector<8x4xf32> to vector<1x8x4xf32>
    tpu.vector_store %arg3[%c0_139, %c8_140, %c28_141], %99 {strides = array<i32>} : memref<1x64x48xf32, #tpu.memory_space<vmem>>, vector<1x8x4xf32>,
    %c0_142 = arith.constant 0 : index
    %c2_143 = arith.constant 2 : index
    %c4_144 = arith.constant 4 : index
    %c0_145 = arith.constant 0 : index
    %c0_146 = arith.constant 0 : index
    %100 = vector.load %arg2[%c0_142, %c2_143, %c4_144, %c0_145, %c0_146] : memref<1x3x32x8x4xf32, #tpu.memory_space<vmem>>, vector<1x1x1x8x4xf32>
    %101 = vector.shape_cast %100 : vector<1x1x1x8x4xf32> to vector<8x4xf32>
    %c0_147 = arith.constant 0 : index
    %c8_148 = arith.constant 8 : index
    %c32_149 = arith.constant 32 : index
    %102 = vector.load %arg3[%c0_147, %c8_148, %c32_149] : memref<1x64x48xf32, #tpu.memory_space<vmem>>, vector<1x8x4xf32>
    %103 = vector.shape_cast %102 : vector<1x8x4xf32> to vector<8x4xf32>
    %104 = vector.shape_cast %101 : vector<8x4xf32> to vector<1x8x4xf32>
    tpu.vector_store %arg3[%c0_147, %c8_148, %c32_149], %104 {strides = array<i32>} : memref<1x64x48xf32, #tpu.memory_space<vmem>>, vector<1x8x4xf32>,
    %c0_150 = arith.constant 0 : index
    %c2_151 = arith.constant 2 : index
    %c5_152 = arith.constant 5 : index
    %c0_153 = arith.constant 0 : index
    %c0_154 = arith.constant 0 : index
    %105 = vector.load %arg2[%c0_150, %c2_151, %c5_152, %c0_153, %c0_154] : memref<1x3x32x8x4xf32, #tpu.memory_space<vmem>>, vector<1x1x1x8x4xf32>
    %106 = vector.shape_cast %105 : vector<1x1x1x8x4xf32> to vector<8x4xf32>
    %c0_155 = arith.constant 0 : index
    %c8_156 = arith.constant 8 : index
    %c36_157 = arith.constant 36 : index
    %107 = vector.load %arg3[%c0_155, %c8_156, %c36_157] : memref<1x64x48xf32, #tpu.memory_space<vmem>>, vector<1x8x4xf32>
    %108 = vector.shape_cast %107 : vector<1x8x4xf32> to vector<8x4xf32>
    %109 = vector.shape_cast %106 : vector<8x4xf32> to vector<1x8x4xf32>
    tpu.vector_store %arg3[%c0_155, %c8_156, %c36_157], %109 {strides = array<i32>} : memref<1x64x48xf32, #tpu.memory_space<vmem>>, vector<1x8x4xf32>,
    %c0_158 = arith.constant 0 : index
    %c2_159 = arith.constant 2 : index
    %c6_160 = arith.constant 6 : index
    %c0_161 = arith.constant 0 : index
    %c0_162 = arith.constant 0 : index
    %110 = vector.load %arg2[%c0_158, %c2_159, %c6_160, %c0_161, %c0_162] : memref<1x3x32x8x4xf32, #tpu.memory_space<vmem>>, vector<1x1x1x8x4xf32>
    %111 = vector.shape_cast %110 : vector<1x1x1x8x4xf32> to vector<8x4xf32>
    %c0_163 = arith.constant 0 : index
    %c8_164 = arith.constant 8 : index
    %c40_165 = arith.constant 40 : index
    %112 = vector.load %arg3[%c0_163, %c8_164, %c40_165] : memref<1x64x48xf32, #tpu.memory_space<vmem>>, vector<1x8x4xf32>
    %113 = vector.shape_cast %112 : vector<1x8x4xf32> to vector<8x4xf32>
    %114 = vector.shape_cast %111 : vector<8x4xf32> to vector<1x8x4xf32>
    tpu.vector_store %arg3[%c0_163, %c8_164, %c40_165], %114 {strides = array<i32>} : memref<1x64x48xf32, #tpu.memory_space<vmem>>, vector<1x8x4xf32>,
    %c0_166 = arith.constant 0 : index
    %c2_167 = arith.constant 2 : index
    %c7_168 = arith.constant 7 : index
    %c0_169 = arith.constant 0 : index
    %c0_170 = arith.constant 0 : index
    %115 = vector.load %arg2[%c0_166, %c2_167, %c7_168, %c0_169, %c0_170] : memref<1x3x32x8x4xf32, #tpu.memory_space<vmem>>, vector<1x1x1x8x4xf32>
    %116 = vector.shape_cast %115 : vector<1x1x1x8x4xf32> to vector<8x4xf32>
    %c0_171 = arith.constant 0 : index
    %c8_172 = arith.constant 8 : index
    %c44_173 = arith.constant 44 : index
    %117 = vector.load %arg3[%c0_171, %c8_172, %c44_173] : memref<1x64x48xf32, #tpu.memory_space<vmem>>, vector<1x8x4xf32>
    %118 = vector.shape_cast %117 : vector<1x8x4xf32> to vector<8x4xf32>
    %119 = vector.shape_cast %116 : vector<8x4xf32> to vector<1x8x4xf32>
    tpu.vector_store %arg3[%c0_171, %c8_172, %c44_173], %119 {strides = array<i32>} : memref<1x64x48xf32, #tpu.memory_space<vmem>>, vector<1x8x4xf32>,
    %c0_174 = arith.constant 0 : index
    %c0_175 = arith.constant 0 : index
    %c8_176 = arith.constant 8 : index
    %c0_177 = arith.constant 0 : index
    %c0_178 = arith.constant 0 : index
    %120 = vector.load %arg2[%c0_174, %c0_175, %c8_176, %c0_177, %c0_178] : memref<1x3x32x8x4xf32, #tpu.memory_space<vmem>>, vector<1x1x1x8x4xf32>
    %121 = vector.shape_cast %120 : vector<1x1x1x8x4xf32> to vector<8x4xf32>
    %c0_179 = arith.constant 0 : index
    %c16_180 = arith.constant 16 : index
    %c0_181 = arith.constant 0 : index
    %122 = vector.load %arg3[%c0_179, %c16_180, %c0_181] : memref<1x64x48xf32, #tpu.memory_space<vmem>>, vector<1x8x4xf32>
    %123 = vector.shape_cast %122 : vector<1x8x4xf32> to vector<8x4xf32>
    %124 = vector.shape_cast %121 : vector<8x4xf32> to vector<1x8x4xf32>
    tpu.vector_store %arg3[%c0_179, %c16_180, %c0_181], %124 {strides = array<i32>} : memref<1x64x48xf32, #tpu.memory_space<vmem>>, vector<1x8x4xf32>,
    %c0_182 = arith.constant 0 : index
    %c0_183 = arith.constant 0 : index
    %c9 = arith.constant 9 : index
    %c0_184 = arith.constant 0 : index
    %c0_185 = arith.constant 0 : index
    %125 = vector.load %arg2[%c0_182, %c0_183, %c9, %c0_184, %c0_185] : memref<1x3x32x8x4xf32, #tpu.memory_space<vmem>>, vector<1x1x1x8x4xf32>
    %126 = vector.shape_cast %125 : vector<1x1x1x8x4xf32> to vector<8x4xf32>
    %c0_186 = arith.constant 0 : index
    %c16_187 = arith.constant 16 : index
    %c4_188 = arith.constant 4 : index
    %127 = vector.load %arg3[%c0_186, %c16_187, %c4_188] : memref<1x64x48xf32, #tpu.memory_space<vmem>>, vector<1x8x4xf32>
    %128 = vector.shape_cast %127 : vector<1x8x4xf32> to vector<8x4xf32>
    %129 = vector.shape_cast %126 : vector<8x4xf32> to vector<1x8x4xf32>
    tpu.vector_store %arg3[%c0_186, %c16_187, %c4_188], %129 {strides = array<i32>} : memref<1x64x48xf32, #tpu.memory_space<vmem>>, vector<1x8x4xf32>,
    %c0_189 = arith.constant 0 : index
    %c0_190 = arith.constant 0 : index
    %c10 = arith.constant 10 : index
    %c0_191 = arith.constant 0 : index
    %c0_192 = arith.constant 0 : index
    %130 = vector.load %arg2[%c0_189, %c0_190, %c10, %c0_191, %c0_192] : memref<1x3x32x8x4xf32, #tpu.memory_space<vmem>>, vector<1x1x1x8x4xf32>
    %131 = vector.shape_cast %130 : vector<1x1x1x8x4xf32> to vector<8x4xf32>
    %c0_193 = arith.constant 0 : index
    %c16_194 = arith.constant 16 : index
    %c8_195 = arith.constant 8 : index
    %132 = vector.load %arg3[%c0_193, %c16_194, %c8_195] : memref<1x64x48xf32, #tpu.memory_space<vmem>>, vector<1x8x4xf32>
    %133 = vector.shape_cast %132 : vector<1x8x4xf32> to vector<8x4xf32>
    %134 = vector.shape_cast %131 : vector<8x4xf32> to vector<1x8x4xf32>
    tpu.vector_store %arg3[%c0_193, %c16_194, %c8_195], %134 {strides = array<i32>} : memref<1x64x48xf32, #tpu.memory_space<vmem>>, vector<1x8x4xf32>,
    %c0_196 = arith.constant 0 : index
    %c0_197 = arith.constant 0 : index
    %c11 = arith.constant 11 : index
    %c0_198 = arith.constant 0 : index
    %c0_199 = arith.constant 0 : index
    %135 = vector.load %arg2[%c0_196, %c0_197, %c11, %c0_198, %c0_199] : memref<1x3x32x8x4xf32, #tpu.memory_space<vmem>>, vector<1x1x1x8x4xf32>
    %136 = vector.shape_cast %135 : vector<1x1x1x8x4xf32> to vector<8x4xf32>
    %c0_200 = arith.constant 0 : index
    %c16_201 = arith.constant 16 : index
    %c12_202 = arith.constant 12 : index
    %137 = vector.load %arg3[%c0_200, %c16_201, %c12_202] : memref<1x64x48xf32, #tpu.memory_space<vmem>>, vector<1x8x4xf32>
    %138 = vector.shape_cast %137 : vector<1x8x4xf32> to vector<8x4xf32>
    %139 = vector.shape_cast %136 : vector<8x4xf32> to vector<1x8x4xf32>
    tpu.vector_store %arg3[%c0_200, %c16_201, %c12_202], %139 {strides = array<i32>} : memref<1x64x48xf32, #tpu.memory_space<vmem>>, vector<1x8x4xf32>,
    %c0_203 = arith.constant 0 : index
    %c1_204 = arith.constant 1 : index
    %c8_205 = arith.constant 8 : index
    %c0_206 = arith.constant 0 : index
    %c0_207 = arith.constant 0 : index
    %140 = vector.load %arg2[%c0_203, %c1_204, %c8_205, %c0_206, %c0_207] : memref<1x3x32x8x4xf32, #tpu.memory_space<vmem>>, vector<1x1x1x8x4xf32>
    %141 = vector.shape_cast %140 : vector<1x1x1x8x4xf32> to vector<8x4xf32>
    %c0_208 = arith.constant 0 : index
    %c16_209 = arith.constant 16 : index
    %c16_210 = arith.constant 16 : index
    %142 = vector.load %arg3[%c0_208, %c16_209, %c16_210] : memref<1x64x48xf32, #tpu.memory_space<vmem>>, vector<1x8x4xf32>
    %143 = vector.shape_cast %142 : vector<1x8x4xf32> to vector<8x4xf32>
    %144 = vector.shape_cast %141 : vector<8x4xf32> to vector<1x8x4xf32>
    tpu.vector_store %arg3[%c0_208, %c16_209, %c16_210], %144 {strides = array<i32>} : memref<1x64x48xf32, #tpu.memory_space<vmem>>, vector<1x8x4xf32>,
    %c0_211 = arith.constant 0 : index
    %c1_212 = arith.constant 1 : index
    %c9_213 = arith.constant 9 : index
    %c0_214 = arith.constant 0 : index
    %c0_215 = arith.constant 0 : index
    %145 = vector.load %arg2[%c0_211, %c1_212, %c9_213, %c0_214, %c0_215] : memref<1x3x32x8x4xf32, #tpu.memory_space<vmem>>, vector<1x1x1x8x4xf32>
    %146 = vector.shape_cast %145 : vector<1x1x1x8x4xf32> to vector<8x4xf32>
    %c0_216 = arith.constant 0 : index
    %c16_217 = arith.constant 16 : index
    %c20_218 = arith.constant 20 : index
    %147 = vector.load %arg3[%c0_216, %c16_217, %c20_218] : memref<1x64x48xf32, #tpu.memory_space<vmem>>, vector<1x8x4xf32>
    %148 = vector.shape_cast %147 : vector<1x8x4xf32> to vector<8x4xf32>
    %149 = vector.shape_cast %146 : vector<8x4xf32> to vector<1x8x4xf32>
    tpu.vector_store %arg3[%c0_216, %c16_217, %c20_218], %149 {strides = array<i32>} : memref<1x64x48xf32, #tpu.memory_space<vmem>>, vector<1x8x4xf32>,
    %c0_219 = arith.constant 0 : index
    %c1_220 = arith.constant 1 : index
    %c10_221 = arith.constant 10 : index
    %c0_222 = arith.constant 0 : index
    %c0_223 = arith.constant 0 : index
    %150 = vector.load %arg2[%c0_219, %c1_220, %c10_221, %c0_222, %c0_223] : memref<1x3x32x8x4xf32, #tpu.memory_space<vmem>>, vector<1x1x1x8x4xf32>
    %151 = vector.shape_cast %150 : vector<1x1x1x8x4xf32> to vector<8x4xf32>
    %c0_224 = arith.constant 0 : index
    %c16_225 = arith.constant 16 : index
    %c24_226 = arith.constant 24 : index
    %152 = vector.load %arg3[%c0_224, %c16_225, %c24_226] : memref<1x64x48xf32, #tpu.memory_space<vmem>>, vector<1x8x4xf32>
    %153 = vector.shape_cast %152 : vector<1x8x4xf32> to vector<8x4xf32>
    %154 = vector.shape_cast %151 : vector<8x4xf32> to vector<1x8x4xf32>
    tpu.vector_store %arg3[%c0_224, %c16_225, %c24_226], %154 {strides = array<i32>} : memref<1x64x48xf32, #tpu.memory_space<vmem>>, vector<1x8x4xf32>,
    %c0_227 = arith.constant 0 : index
    %c1_228 = arith.constant 1 : index
    %c11_229 = arith.constant 11 : index
    %c0_230 = arith.constant 0 : index
    %c0_231 = arith.constant 0 : index
    %155 = vector.load %arg2[%c0_227, %c1_228, %c11_229, %c0_230, %c0_231] : memref<1x3x32x8x4xf32, #tpu.memory_space<vmem>>, vector<1x1x1x8x4xf32>
    %156 = vector.shape_cast %155 : vector<1x1x1x8x4xf32> to vector<8x4xf32>
    %c0_232 = arith.constant 0 : index
    %c16_233 = arith.constant 16 : index
    %c28_234 = arith.constant 28 : index
    %157 = vector.load %arg3[%c0_232, %c16_233, %c28_234] : memref<1x64x48xf32, #tpu.memory_space<vmem>>, vector<1x8x4xf32>
    %158 = vector.shape_cast %157 : vector<1x8x4xf32> to vector<8x4xf32>
    %159 = vector.shape_cast %156 : vector<8x4xf32> to vector<1x8x4xf32>
    tpu.vector_store %arg3[%c0_232, %c16_233, %c28_234], %159 {strides = array<i32>} : memref<1x64x48xf32, #tpu.memory_space<vmem>>, vector<1x8x4xf32>,
    %c0_235 = arith.constant 0 : index
    %c2_236 = arith.constant 2 : index
    %c8_237 = arith.constant 8 : index
    %c0_238 = arith.constant 0 : index
    %c0_239 = arith.constant 0 : index
    %160 = vector.load %arg2[%c0_235, %c2_236, %c8_237, %c0_238, %c0_239] : memref<1x3x32x8x4xf32, #tpu.memory_space<vmem>>, vector<1x1x1x8x4xf32>
    %161 = vector.shape_cast %160 : vector<1x1x1x8x4xf32> to vector<8x4xf32>
    %c0_240 = arith.constant 0 : index
    %c16_241 = arith.constant 16 : index
    %c32_242 = arith.constant 32 : index
    %162 = vector.load %arg3[%c0_240, %c16_241, %c32_242] : memref<1x64x48xf32, #tpu.memory_space<vmem>>, vector<1x8x4xf32>
    %163 = vector.shape_cast %162 : vector<1x8x4xf32> to vector<8x4xf32>
    %164 = vector.shape_cast %161 : vector<8x4xf32> to vector<1x8x4xf32>
    tpu.vector_store %arg3[%c0_240, %c16_241, %c32_242], %164 {strides = array<i32>} : memref<1x64x48xf32, #tpu.memory_space<vmem>>, vector<1x8x4xf32>,
    %c0_243 = arith.constant 0 : index
    %c2_244 = arith.constant 2 : index
    %c9_245 = arith.constant 9 : index
    %c0_246 = arith.constant 0 : index
    %c0_247 = arith.constant 0 : index
    %165 = vector.load %arg2[%c0_243, %c2_244, %c9_245, %c0_246, %c0_247] : memref<1x3x32x8x4xf32, #tpu.memory_space<vmem>>, vector<1x1x1x8x4xf32>
    %166 = vector.shape_cast %165 : vector<1x1x1x8x4xf32> to vector<8x4xf32>
    %c0_248 = arith.constant 0 : index
    %c16_249 = arith.constant 16 : index
    %c36_250 = arith.constant 36 : index
    %167 = vector.load %arg3[%c0_248, %c16_249, %c36_250] : memref<1x64x48xf32, #tpu.memory_space<vmem>>, vector<1x8x4xf32>
    %168 = vector.shape_cast %167 : vector<1x8x4xf32> to vector<8x4xf32>
    %169 = vector.shape_cast %166 : vector<8x4xf32> to vector<1x8x4xf32>
    tpu.vector_store %arg3[%c0_248, %c16_249, %c36_250], %169 {strides = array<i32>} : memref<1x64x48xf32, #tpu.memory_space<vmem>>, vector<1x8x4xf32>,
    %c0_251 = arith.constant 0 : index
    %c2_252 = arith.constant 2 : index
    %c10_253 = arith.constant 10 : index
    %c0_254 = arith.constant 0 : index
    %c0_255 = arith.constant 0 : index
    %170 = vector.load %arg2[%c0_251, %c2_252, %c10_253, %c0_254, %c0_255] : memref<1x3x32x8x4xf32, #tpu.memory_space<vmem>>, vector<1x1x1x8x4xf32>
    %171 = vector.shape_cast %170 : vector<1x1x1x8x4xf32> to vector<8x4xf32>
    %c0_256 = arith.constant 0 : index
    %c16_257 = arith.constant 16 : index
    %c40_258 = arith.constant 40 : index
    %172 = vector.load %arg3[%c0_256, %c16_257, %c40_258] : memref<1x64x48xf32, #tpu.memory_space<vmem>>, vector<1x8x4xf32>
    %173 = vector.shape_cast %172 : vector<1x8x4xf32> to vector<8x4xf32>
    %174 = vector.shape_cast %171 : vector<8x4xf32> to vector<1x8x4xf32>
    tpu.vector_store %arg3[%c0_256, %c16_257, %c40_258], %174 {strides = array<i32>} : memref<1x64x48xf32, #tpu.memory_space<vmem>>, vector<1x8x4xf32>,
    %c0_259 = arith.constant 0 : index
    %c2_260 = arith.constant 2 : index
    %c11_261 = arith.constant 11 : index
    %c0_262 = arith.constant 0 : index
    %c0_263 = arith.constant 0 : index
    %175 = vector.load %arg2[%c0_259, %c2_260, %c11_261, %c0_262, %c0_263] : memref<1x3x32x8x4xf32, #tpu.memory_space<vmem>>, vector<1x1x1x8x4xf32>
    %176 = vector.shape_cast %175 : vector<1x1x1x8x4xf32> to vector<8x4xf32>
    %c0_264 = arith.constant 0 : index
    %c16_265 = arith.constant 16 : index
    %c44_266 = arith.constant 44 : index
    %177 = vector.load %arg3[%c0_264, %c16_265, %c44_266] : memref<1x64x48xf32, #tpu.memory_space<vmem>>, vector<1x8x4xf32>
    %178 = vector.shape_cast %177 : vector<1x8x4xf32> to vector<8x4xf32>
    %179 = vector.shape_cast %176 : vector<8x4xf32> to vector<1x8x4xf32>
    tpu.vector_store %arg3[%c0_264, %c16_265, %c44_266], %179 {strides = array<i32>} : memref<1x64x48xf32, #tpu.memory_space<vmem>>, vector<1x8x4xf32>,
    %c0_267 = arith.constant 0 : index
    %c0_268 = arith.constant 0 : index
    %c12_269 = arith.constant 12 : index
    %c0_270 = arith.constant 0 : index
    %c0_271 = arith.constant 0 : index
    %180 = vector.load %arg2[%c0_267, %c0_268, %c12_269, %c0_270, %c0_271] : memref<1x3x32x8x4xf32, #tpu.memory_space<vmem>>, vector<1x1x1x8x4xf32>
    %181 = vector.shape_cast %180 : vector<1x1x1x8x4xf32> to vector<8x4xf32>
    %c0_272 = arith.constant 0 : index
    %c24_273 = arith.constant 24 : index
    %c0_274 = arith.constant 0 : index
    %182 = vector.load %arg3[%c0_272, %c24_273, %c0_274] : memref<1x64x48xf32, #tpu.memory_space<vmem>>, vector<1x8x4xf32>
    %183 = vector.shape_cast %182 : vector<1x8x4xf32> to vector<8x4xf32>
    %184 = vector.shape_cast %181 : vector<8x4xf32> to vector<1x8x4xf32>
    tpu.vector_store %arg3[%c0_272, %c24_273, %c0_274], %184 {strides = array<i32>} : memref<1x64x48xf32, #tpu.memory_space<vmem>>, vector<1x8x4xf32>,
    %c0_275 = arith.constant 0 : index
    %c0_276 = arith.constant 0 : index
    %c13 = arith.constant 13 : index
    %c0_277 = arith.constant 0 : index
    %c0_278 = arith.constant 0 : index
    %185 = vector.load %arg2[%c0_275, %c0_276, %c13, %c0_277, %c0_278] : memref<1x3x32x8x4xf32, #tpu.memory_space<vmem>>, vector<1x1x1x8x4xf32>
    %186 = vector.shape_cast %185 : vector<1x1x1x8x4xf32> to vector<8x4xf32>
    %c0_279 = arith.constant 0 : index
    %c24_280 = arith.constant 24 : index
    %c4_281 = arith.constant 4 : index
    %187 = vector.load %arg3[%c0_279, %c24_280, %c4_281] : memref<1x64x48xf32, #tpu.memory_space<vmem>>, vector<1x8x4xf32>
    %188 = vector.shape_cast %187 : vector<1x8x4xf32> to vector<8x4xf32>
    %189 = vector.shape_cast %186 : vector<8x4xf32> to vector<1x8x4xf32>
    tpu.vector_store %arg3[%c0_279, %c24_280, %c4_281], %189 {strides = array<i32>} : memref<1x64x48xf32, #tpu.memory_space<vmem>>, vector<1x8x4xf32>,
    %c0_282 = arith.constant 0 : index
    %c0_283 = arith.constant 0 : index
    %c14 = arith.constant 14 : index
    %c0_284 = arith.constant 0 : index
    %c0_285 = arith.constant 0 : index
    %190 = vector.load %arg2[%c0_282, %c0_283, %c14, %c0_284, %c0_285] : memref<1x3x32x8x4xf32, #tpu.memory_space<vmem>>, vector<1x1x1x8x4xf32>
    %191 = vector.shape_cast %190 : vector<1x1x1x8x4xf32> to vector<8x4xf32>
    %c0_286 = arith.constant 0 : index
    %c24_287 = arith.constant 24 : index
    %c8_288 = arith.constant 8 : index
    %192 = vector.load %arg3[%c0_286, %c24_287, %c8_288] : memref<1x64x48xf32, #tpu.memory_space<vmem>>, vector<1x8x4xf32>
    %193 = vector.shape_cast %192 : vector<1x8x4xf32> to vector<8x4xf32>
    %194 = vector.shape_cast %191 : vector<8x4xf32> to vector<1x8x4xf32>
    tpu.vector_store %arg3[%c0_286, %c24_287, %c8_288], %194 {strides = array<i32>} : memref<1x64x48xf32, #tpu.memory_space<vmem>>, vector<1x8x4xf32>,
    %c0_289 = arith.constant 0 : index
    %c0_290 = arith.constant 0 : index
    %c15 = arith.constant 15 : index
    %c0_291 = arith.constant 0 : index
    %c0_292 = arith.constant 0 : index
    %195 = vector.load %arg2[%c0_289, %c0_290, %c15, %c0_291, %c0_292] : memref<1x3x32x8x4xf32, #tpu.memory_space<vmem>>, vector<1x1x1x8x4xf32>
    %196 = vector.shape_cast %195 : vector<1x1x1x8x4xf32> to vector<8x4xf32>
    %c0_293 = arith.constant 0 : index
    %c24_294 = arith.constant 24 : index
    %c12_295 = arith.constant 12 : index
    %197 = vector.load %arg3[%c0_293, %c24_294, %c12_295] : memref<1x64x48xf32, #tpu.memory_space<vmem>>, vector<1x8x4xf32>
    %198 = vector.shape_cast %197 : vector<1x8x4xf32> to vector<8x4xf32>
    %199 = vector.shape_cast %196 : vector<8x4xf32> to vector<1x8x4xf32>
    tpu.vector_store %arg3[%c0_293, %c24_294, %c12_295], %199 {strides = array<i32>} : memref<1x64x48xf32, #tpu.memory_space<vmem>>, vector<1x8x4xf32>,
    %c0_296 = arith.constant 0 : index
    %c1_297 = arith.constant 1 : index
    %c12_298 = arith.constant 12 : index
    %c0_299 = arith.constant 0 : index
    %c0_300 = arith.constant 0 : index
    %200 = vector.load %arg2[%c0_296, %c1_297, %c12_298, %c0_299, %c0_300] : memref<1x3x32x8x4xf32, #tpu.memory_space<vmem>>, vector<1x1x1x8x4xf32>
    %201 = vector.shape_cast %200 : vector<1x1x1x8x4xf32> to vector<8x4xf32>
    %c0_301 = arith.constant 0 : index
    %c24_302 = arith.constant 24 : index
    %c16_303 = arith.constant 16 : index
    %202 = vector.load %arg3[%c0_301, %c24_302, %c16_303] : memref<1x64x48xf32, #tpu.memory_space<vmem>>, vector<1x8x4xf32>
    %203 = vector.shape_cast %202 : vector<1x8x4xf32> to vector<8x4xf32>
    %204 = vector.shape_cast %201 : vector<8x4xf32> to vector<1x8x4xf32>
    tpu.vector_store %arg3[%c0_301, %c24_302, %c16_303], %204 {strides = array<i32>} : memref<1x64x48xf32, #tpu.memory_space<vmem>>, vector<1x8x4xf32>,
    %c0_304 = arith.constant 0 : index
    %c1_305 = arith.constant 1 : index
    %c13_306 = arith.constant 13 : index
    %c0_307 = arith.constant 0 : index
    %c0_308 = arith.constant 0 : index
    %205 = vector.load %arg2[%c0_304, %c1_305, %c13_306, %c0_307, %c0_308] : memref<1x3x32x8x4xf32, #tpu.memory_space<vmem>>, vector<1x1x1x8x4xf32>
    %206 = vector.shape_cast %205 : vector<1x1x1x8x4xf32> to vector<8x4xf32>
    %c0_309 = arith.constant 0 : index
    %c24_310 = arith.constant 24 : index
    %c20_311 = arith.constant 20 : index
    %207 = vector.load %arg3[%c0_309, %c24_310, %c20_311] : memref<1x64x48xf32, #tpu.memory_space<vmem>>, vector<1x8x4xf32>
    %208 = vector.shape_cast %207 : vector<1x8x4xf32> to vector<8x4xf32>
    %209 = vector.shape_cast %206 : vector<8x4xf32> to vector<1x8x4xf32>
    tpu.vector_store %arg3[%c0_309, %c24_310, %c20_311], %209 {strides = array<i32>} : memref<1x64x48xf32, #tpu.memory_space<vmem>>, vector<1x8x4xf32>,
    %c0_312 = arith.constant 0 : index
    %c1_313 = arith.constant 1 : index
    %c14_314 = arith.constant 14 : index
    %c0_315 = arith.constant 0 : index
    %c0_316 = arith.constant 0 : index
    %210 = vector.load %arg2[%c0_312, %c1_313, %c14_314, %c0_315, %c0_316] : memref<1x3x32x8x4xf32, #tpu.memory_space<vmem>>, vector<1x1x1x8x4xf32>
    %211 = vector.shape_cast %210 : vector<1x1x1x8x4xf32> to vector<8x4xf32>
    %c0_317 = arith.constant 0 : index
    %c24_318 = arith.constant 24 : index
    %c24_319 = arith.constant 24 : index
    %212 = vector.load %arg3[%c0_317, %c24_318, %c24_319] : memref<1x64x48xf32, #tpu.memory_space<vmem>>, vector<1x8x4xf32>
    %213 = vector.shape_cast %212 : vector<1x8x4xf32> to vector<8x4xf32>
    %214 = vector.shape_cast %211 : vector<8x4xf32> to vector<1x8x4xf32>
    tpu.vector_store %arg3[%c0_317, %c24_318, %c24_319], %214 {strides = array<i32>} : memref<1x64x48xf32, #tpu.memory_space<vmem>>, vector<1x8x4xf32>,
    %c0_320 = arith.constant 0 : index
    %c1_321 = arith.constant 1 : index
    %c15_322 = arith.constant 15 : index
    %c0_323 = arith.constant 0 : index
    %c0_324 = arith.constant 0 : index
    %215 = vector.load %arg2[%c0_320, %c1_321, %c15_322, %c0_323, %c0_324] : memref<1x3x32x8x4xf32, #tpu.memory_space<vmem>>, vector<1x1x1x8x4xf32>
    %216 = vector.shape_cast %215 : vector<1x1x1x8x4xf32> to vector<8x4xf32>
    %c0_325 = arith.constant 0 : index
    %c24_326 = arith.constant 24 : index
    %c28_327 = arith.constant 28 : index
    %217 = vector.load %arg3[%c0_325, %c24_326, %c28_327] : memref<1x64x48xf32, #tpu.memory_space<vmem>>, vector<1x8x4xf32>
    %218 = vector.shape_cast %217 : vector<1x8x4xf32> to vector<8x4xf32>
    %219 = vector.shape_cast %216 : vector<8x4xf32> to vector<1x8x4xf32>
    tpu.vector_store %arg3[%c0_325, %c24_326, %c28_327], %219 {strides = array<i32>} : memref<1x64x48xf32, #tpu.memory_space<vmem>>, vector<1x8x4xf32>,
    %c0_328 = arith.constant 0 : index
    %c2_329 = arith.constant 2 : index
    %c12_330 = arith.constant 12 : index
    %c0_331 = arith.constant 0 : index
    %c0_332 = arith.constant 0 : index
    %220 = vector.load %arg2[%c0_328, %c2_329, %c12_330, %c0_331, %c0_332] : memref<1x3x32x8x4xf32, #tpu.memory_space<vmem>>, vector<1x1x1x8x4xf32>
    %221 = vector.shape_cast %220 : vector<1x1x1x8x4xf32> to vector<8x4xf32>
    %c0_333 = arith.constant 0 : index
    %c24_334 = arith.constant 24 : index
    %c32_335 = arith.constant 32 : index
    %222 = vector.load %arg3[%c0_333, %c24_334, %c32_335] : memref<1x64x48xf32, #tpu.memory_space<vmem>>, vector<1x8x4xf32>
    %223 = vector.shape_cast %222 : vector<1x8x4xf32> to vector<8x4xf32>
    %224 = vector.shape_cast %221 : vector<8x4xf32> to vector<1x8x4xf32>
    tpu.vector_store %arg3[%c0_333, %c24_334, %c32_335], %224 {strides = array<i32>} : memref<1x64x48xf32, #tpu.memory_space<vmem>>, vector<1x8x4xf32>,
    %c0_336 = arith.constant 0 : index
    %c2_337 = arith.constant 2 : index
    %c13_338 = arith.constant 13 : index
    %c0_339 = arith.constant 0 : index
    %c0_340 = arith.constant 0 : index
    %225 = vector.load %arg2[%c0_336, %c2_337, %c13_338, %c0_339, %c0_340] : memref<1x3x32x8x4xf32, #tpu.memory_space<vmem>>, vector<1x1x1x8x4xf32>
    %226 = vector.shape_cast %225 : vector<1x1x1x8x4xf32> to vector<8x4xf32>
    %c0_341 = arith.constant 0 : index
    %c24_342 = arith.constant 24 : index
    %c36_343 = arith.constant 36 : index
    %227 = vector.load %arg3[%c0_341, %c24_342, %c36_343] : memref<1x64x48xf32, #tpu.memory_space<vmem>>, vector<1x8x4xf32>
    %228 = vector.shape_cast %227 : vector<1x8x4xf32> to vector<8x4xf32>
    %229 = vector.shape_cast %226 : vector<8x4xf32> to vector<1x8x4xf32>
    tpu.vector_store %arg3[%c0_341, %c24_342, %c36_343], %229 {strides = array<i32>} : memref<1x64x48xf32, #tpu.memory_space<vmem>>, vector<1x8x4xf32>,
    %c0_344 = arith.constant 0 : index
    %c2_345 = arith.constant 2 : index
    %c14_346 = arith.constant 14 : index
    %c0_347 = arith.constant 0 : index
    %c0_348 = arith.constant 0 : index
    %230 = vector.load %arg2[%c0_344, %c2_345, %c14_346, %c0_347, %c0_348] : memref<1x3x32x8x4xf32, #tpu.memory_space<vmem>>, vector<1x1x1x8x4xf32>
    %231 = vector.shape_cast %230 : vector<1x1x1x8x4xf32> to vector<8x4xf32>
    %c0_349 = arith.constant 0 : index
    %c24_350 = arith.constant 24 : index
    %c40_351 = arith.constant 40 : index
    %232 = vector.load %arg3[%c0_349, %c24_350, %c40_351] : memref<1x64x48xf32, #tpu.memory_space<vmem>>, vector<1x8x4xf32>
    %233 = vector.shape_cast %232 : vector<1x8x4xf32> to vector<8x4xf32>
    %234 = vector.shape_cast %231 : vector<8x4xf32> to vector<1x8x4xf32>
    tpu.vector_store %arg3[%c0_349, %c24_350, %c40_351], %234 {strides = array<i32>} : memref<1x64x48xf32, #tpu.memory_space<vmem>>, vector<1x8x4xf32>,
    %c0_352 = arith.constant 0 : index
    %c2_353 = arith.constant 2 : index
    %c15_354 = arith.constant 15 : index
    %c0_355 = arith.constant 0 : index
    %c0_356 = arith.constant 0 : index
    %235 = vector.load %arg2[%c0_352, %c2_353, %c15_354, %c0_355, %c0_356] : memref<1x3x32x8x4xf32, #tpu.memory_space<vmem>>, vector<1x1x1x8x4xf32>
    %236 = vector.shape_cast %235 : vector<1x1x1x8x4xf32> to vector<8x4xf32>
    %c0_357 = arith.constant 0 : index
    %c24_358 = arith.constant 24 : index
    %c44_359 = arith.constant 44 : index
    %237 = vector.load %arg3[%c0_357, %c24_358, %c44_359] : memref<1x64x48xf32, #tpu.memory_space<vmem>>, vector<1x8x4xf32>
    %238 = vector.shape_cast %237 : vector<1x8x4xf32> to vector<8x4xf32>
    %239 = vector.shape_cast %236 : vector<8x4xf32> to vector<1x8x4xf32>
    tpu.vector_store %arg3[%c0_357, %c24_358, %c44_359], %239 {strides = array<i32>} : memref<1x64x48xf32, #tpu.memory_space<vmem>>, vector<1x8x4xf32>,
    %c0_360 = arith.constant 0 : index
    %c0_361 = arith.constant 0 : index
    %c16_362 = arith.constant 16 : index
    %c0_363 = arith.constant 0 : index
    %c0_364 = arith.constant 0 : index
    %240 = vector.load %arg2[%c0_360, %c0_361, %c16_362, %c0_363, %c0_364] : memref<1x3x32x8x4xf32, #tpu.memory_space<vmem>>, vector<1x1x1x8x4xf32>
    %241 = vector.shape_cast %240 : vector<1x1x1x8x4xf32> to vector<8x4xf32>
    %c0_365 = arith.constant 0 : index
    %c32_366 = arith.constant 32 : index
    %c0_367 = arith.constant 0 : index
    %242 = vector.load %arg3[%c0_365, %c32_366, %c0_367] : memref<1x64x48xf32, #tpu.memory_space<vmem>>, vector<1x8x4xf32>
    %243 = vector.shape_cast %242 : vector<1x8x4xf32> to vector<8x4xf32>
    %244 = vector.shape_cast %241 : vector<8x4xf32> to vector<1x8x4xf32>
    tpu.vector_store %arg3[%c0_365, %c32_366, %c0_367], %244 {strides = array<i32>} : memref<1x64x48xf32, #tpu.memory_space<vmem>>, vector<1x8x4xf32>,
    %c0_368 = arith.constant 0 : index
    %c0_369 = arith.constant 0 : index
    %c17 = arith.constant 17 : index
    %c0_370 = arith.constant 0 : index
    %c0_371 = arith.constant 0 : index
    %245 = vector.load %arg2[%c0_368, %c0_369, %c17, %c0_370, %c0_371] : memref<1x3x32x8x4xf32, #tpu.memory_space<vmem>>, vector<1x1x1x8x4xf32>
    %246 = vector.shape_cast %245 : vector<1x1x1x8x4xf32> to vector<8x4xf32>
    %c0_372 = arith.constant 0 : index
    %c32_373 = arith.constant 32 : index
    %c4_374 = arith.constant 4 : index
    %247 = vector.load %arg3[%c0_372, %c32_373, %c4_374] : memref<1x64x48xf32, #tpu.memory_space<vmem>>, vector<1x8x4xf32>
    %248 = vector.shape_cast %247 : vector<1x8x4xf32> to vector<8x4xf32>
    %249 = vector.shape_cast %246 : vector<8x4xf32> to vector<1x8x4xf32>
    tpu.vector_store %arg3[%c0_372, %c32_373, %c4_374], %249 {strides = array<i32>} : memref<1x64x48xf32, #tpu.memory_space<vmem>>, vector<1x8x4xf32>,
    %c0_375 = arith.constant 0 : index
    %c0_376 = arith.constant 0 : index
    %c18 = arith.constant 18 : index
    %c0_377 = arith.constant 0 : index
    %c0_378 = arith.constant 0 : index
    %250 = vector.load %arg2[%c0_375, %c0_376, %c18, %c0_377, %c0_378] : memref<1x3x32x8x4xf32, #tpu.memory_space<vmem>>, vector<1x1x1x8x4xf32>
    %251 = vector.shape_cast %250 : vector<1x1x1x8x4xf32> to vector<8x4xf32>
    %c0_379 = arith.constant 0 : index
    %c32_380 = arith.constant 32 : index
    %c8_381 = arith.constant 8 : index
    %252 = vector.load %arg3[%c0_379, %c32_380, %c8_381] : memref<1x64x48xf32, #tpu.memory_space<vmem>>, vector<1x8x4xf32>
    %253 = vector.shape_cast %252 : vector<1x8x4xf32> to vector<8x4xf32>
    %254 = vector.shape_cast %251 : vector<8x4xf32> to vector<1x8x4xf32>
    tpu.vector_store %arg3[%c0_379, %c32_380, %c8_381], %254 {strides = array<i32>} : memref<1x64x48xf32, #tpu.memory_space<vmem>>, vector<1x8x4xf32>,
    %c0_382 = arith.constant 0 : index
    %c0_383 = arith.constant 0 : index
    %c19 = arith.constant 19 : index
    %c0_384 = arith.constant 0 : index
    %c0_385 = arith.constant 0 : index
    %255 = vector.load %arg2[%c0_382, %c0_383, %c19, %c0_384, %c0_385] : memref<1x3x32x8x4xf32, #tpu.memory_space<vmem>>, vector<1x1x1x8x4xf32>
    %256 = vector.shape_cast %255 : vector<1x1x1x8x4xf32> to vector<8x4xf32>
    %c0_386 = arith.constant 0 : index
    %c32_387 = arith.constant 32 : index
    %c12_388 = arith.constant 12 : index
    %257 = vector.load %arg3[%c0_386, %c32_387, %c12_388] : memref<1x64x48xf32, #tpu.memory_space<vmem>>, vector<1x8x4xf32>
    %258 = vector.shape_cast %257 : vector<1x8x4xf32> to vector<8x4xf32>
    %259 = vector.shape_cast %256 : vector<8x4xf32> to vector<1x8x4xf32>
    tpu.vector_store %arg3[%c0_386, %c32_387, %c12_388], %259 {strides = array<i32>} : memref<1x64x48xf32, #tpu.memory_space<vmem>>, vector<1x8x4xf32>,
    %c0_389 = arith.constant 0 : index
    %c1_390 = arith.constant 1 : index
    %c16_391 = arith.constant 16 : index
    %c0_392 = arith.constant 0 : index
    %c0_393 = arith.constant 0 : index
    %260 = vector.load %arg2[%c0_389, %c1_390, %c16_391, %c0_392, %c0_393] : memref<1x3x32x8x4xf32, #tpu.memory_space<vmem>>, vector<1x1x1x8x4xf32>
    %261 = vector.shape_cast %260 : vector<1x1x1x8x4xf32> to vector<8x4xf32>
    %c0_394 = arith.constant 0 : index
    %c32_395 = arith.constant 32 : index
    %c16_396 = arith.constant 16 : index
    %262 = vector.load %arg3[%c0_394, %c32_395, %c16_396] : memref<1x64x48xf32, #tpu.memory_space<vmem>>, vector<1x8x4xf32>
    %263 = vector.shape_cast %262 : vector<1x8x4xf32> to vector<8x4xf32>
    %264 = vector.shape_cast %261 : vector<8x4xf32> to vector<1x8x4xf32>
    tpu.vector_store %arg3[%c0_394, %c32_395, %c16_396], %264 {strides = array<i32>} : memref<1x64x48xf32, #tpu.memory_space<vmem>>, vector<1x8x4xf32>,
    %c0_397 = arith.constant 0 : index
    %c1_398 = arith.constant 1 : index
    %c17_399 = arith.constant 17 : index
    %c0_400 = arith.constant 0 : index
    %c0_401 = arith.constant 0 : index
    %265 = vector.load %arg2[%c0_397, %c1_398, %c17_399, %c0_400, %c0_401] : memref<1x3x32x8x4xf32, #tpu.memory_space<vmem>>, vector<1x1x1x8x4xf32>
    %266 = vector.shape_cast %265 : vector<1x1x1x8x4xf32> to vector<8x4xf32>
    %c0_402 = arith.constant 0 : index
    %c32_403 = arith.constant 32 : index
    %c20_404 = arith.constant 20 : index
    %267 = vector.load %arg3[%c0_402, %c32_403, %c20_404] : memref<1x64x48xf32, #tpu.memory_space<vmem>>, vector<1x8x4xf32>
    %268 = vector.shape_cast %267 : vector<1x8x4xf32> to vector<8x4xf32>
    %269 = vector.shape_cast %266 : vector<8x4xf32> to vector<1x8x4xf32>
    tpu.vector_store %arg3[%c0_402, %c32_403, %c20_404], %269 {strides = array<i32>} : memref<1x64x48xf32, #tpu.memory_space<vmem>>, vector<1x8x4xf32>,
    %c0_405 = arith.constant 0 : index
    %c1_406 = arith.constant 1 : index
    %c18_407 = arith.constant 18 : index
    %c0_408 = arith.constant 0 : index
    %c0_409 = arith.constant 0 : index
    %270 = vector.load %arg2[%c0_405, %c1_406, %c18_407, %c0_408, %c0_409] : memref<1x3x32x8x4xf32, #tpu.memory_space<vmem>>, vector<1x1x1x8x4xf32>
    %271 = vector.shape_cast %270 : vector<1x1x1x8x4xf32> to vector<8x4xf32>
    %c0_410 = arith.constant 0 : index
    %c32_411 = arith.constant 32 : index
    %c24_412 = arith.constant 24 : index
    %272 = vector.load %arg3[%c0_410, %c32_411, %c24_412] : memref<1x64x48xf32, #tpu.memory_space<vmem>>, vector<1x8x4xf32>
    %273 = vector.shape_cast %272 : vector<1x8x4xf32> to vector<8x4xf32>
    %274 = vector.shape_cast %271 : vector<8x4xf32> to vector<1x8x4xf32>
    tpu.vector_store %arg3[%c0_410, %c32_411, %c24_412], %274 {strides = array<i32>} : memref<1x64x48xf32, #tpu.memory_space<vmem>>, vector<1x8x4xf32>,
    %c0_413 = arith.constant 0 : index
    %c1_414 = arith.constant 1 : index
    %c19_415 = arith.constant 19 : index
    %c0_416 = arith.constant 0 : index
    %c0_417 = arith.constant 0 : index
    %275 = vector.load %arg2[%c0_413, %c1_414, %c19_415, %c0_416, %c0_417] : memref<1x3x32x8x4xf32, #tpu.memory_space<vmem>>, vector<1x1x1x8x4xf32>
    %276 = vector.shape_cast %275 : vector<1x1x1x8x4xf32> to vector<8x4xf32>
    %c0_418 = arith.constant 0 : index
    %c32_419 = arith.constant 32 : index
    %c28_420 = arith.constant 28 : index
    %277 = vector.load %arg3[%c0_418, %c32_419, %c28_420] : memref<1x64x48xf32, #tpu.memory_space<vmem>>, vector<1x8x4xf32>
    %278 = vector.shape_cast %277 : vector<1x8x4xf32> to vector<8x4xf32>
    %279 = vector.shape_cast %276 : vector<8x4xf32> to vector<1x8x4xf32>
    tpu.vector_store %arg3[%c0_418, %c32_419, %c28_420], %279 {strides = array<i32>} : memref<1x64x48xf32, #tpu.memory_space<vmem>>, vector<1x8x4xf32>,
    %c0_421 = arith.constant 0 : index
    %c2_422 = arith.constant 2 : index
    %c16_423 = arith.constant 16 : index
    %c0_424 = arith.constant 0 : index
    %c0_425 = arith.constant 0 : index
    %280 = vector.load %arg2[%c0_421, %c2_422, %c16_423, %c0_424, %c0_425] : memref<1x3x32x8x4xf32, #tpu.memory_space<vmem>>, vector<1x1x1x8x4xf32>
    %281 = vector.shape_cast %280 : vector<1x1x1x8x4xf32> to vector<8x4xf32>
    %c0_426 = arith.constant 0 : index
    %c32_427 = arith.constant 32 : index
    %c32_428 = arith.constant 32 : index
    %282 = vector.load %arg3[%c0_426, %c32_427, %c32_428] : memref<1x64x48xf32, #tpu.memory_space<vmem>>, vector<1x8x4xf32>
    %283 = vector.shape_cast %282 : vector<1x8x4xf32> to vector<8x4xf32>
    %284 = vector.shape_cast %281 : vector<8x4xf32> to vector<1x8x4xf32>
    tpu.vector_store %arg3[%c0_426, %c32_427, %c32_428], %284 {strides = array<i32>} : memref<1x64x48xf32, #tpu.memory_space<vmem>>, vector<1x8x4xf32>,
    %c0_429 = arith.constant 0 : index
    %c2_430 = arith.constant 2 : index
    %c17_431 = arith.constant 17 : index
    %c0_432 = arith.constant 0 : index
    %c0_433 = arith.constant 0 : index
    %285 = vector.load %arg2[%c0_429, %c2_430, %c17_431, %c0_432, %c0_433] : memref<1x3x32x8x4xf32, #tpu.memory_space<vmem>>, vector<1x1x1x8x4xf32>
    %286 = vector.shape_cast %285 : vector<1x1x1x8x4xf32> to vector<8x4xf32>
    %c0_434 = arith.constant 0 : index
    %c32_435 = arith.constant 32 : index
    %c36_436 = arith.constant 36 : index
    %287 = vector.load %arg3[%c0_434, %c32_435, %c36_436] : memref<1x64x48xf32, #tpu.memory_space<vmem>>, vector<1x8x4xf32>
    %288 = vector.shape_cast %287 : vector<1x8x4xf32> to vector<8x4xf32>
    %289 = vector.shape_cast %286 : vector<8x4xf32> to vector<1x8x4xf32>
    tpu.vector_store %arg3[%c0_434, %c32_435, %c36_436], %289 {strides = array<i32>} : memref<1x64x48xf32, #tpu.memory_space<vmem>>, vector<1x8x4xf32>,
    %c0_437 = arith.constant 0 : index
    %c2_438 = arith.constant 2 : index
    %c18_439 = arith.constant 18 : index
    %c0_440 = arith.constant 0 : index
    %c0_441 = arith.constant 0 : index
    %290 = vector.load %arg2[%c0_437, %c2_438, %c18_439, %c0_440, %c0_441] : memref<1x3x32x8x4xf32, #tpu.memory_space<vmem>>, vector<1x1x1x8x4xf32>
    %291 = vector.shape_cast %290 : vector<1x1x1x8x4xf32> to vector<8x4xf32>
    %c0_442 = arith.constant 0 : index
    %c32_443 = arith.constant 32 : index
    %c40_444 = arith.constant 40 : index
    %292 = vector.load %arg3[%c0_442, %c32_443, %c40_444] : memref<1x64x48xf32, #tpu.memory_space<vmem>>, vector<1x8x4xf32>
    %293 = vector.shape_cast %292 : vector<1x8x4xf32> to vector<8x4xf32>
    %294 = vector.shape_cast %291 : vector<8x4xf32> to vector<1x8x4xf32>
    tpu.vector_store %arg3[%c0_442, %c32_443, %c40_444], %294 {strides = array<i32>} : memref<1x64x48xf32, #tpu.memory_space<vmem>>, vector<1x8x4xf32>,
    %c0_445 = arith.constant 0 : index
    %c2_446 = arith.constant 2 : index
    %c19_447 = arith.constant 19 : index
    %c0_448 = arith.constant 0 : index
    %c0_449 = arith.constant 0 : index
    %295 = vector.load %arg2[%c0_445, %c2_446, %c19_447, %c0_448, %c0_449] : memref<1x3x32x8x4xf32, #tpu.memory_space<vmem>>, vector<1x1x1x8x4xf32>
    %296 = vector.shape_cast %295 : vector<1x1x1x8x4xf32> to vector<8x4xf32>
    %c0_450 = arith.constant 0 : index
    %c32_451 = arith.constant 32 : index
    %c44_452 = arith.constant 44 : index
    %297 = vector.load %arg3[%c0_450, %c32_451, %c44_452] : memref<1x64x48xf32, #tpu.memory_space<vmem>>, vector<1x8x4xf32>
    %298 = vector.shape_cast %297 : vector<1x8x4xf32> to vector<8x4xf32>
    %299 = vector.shape_cast %296 : vector<8x4xf32> to vector<1x8x4xf32>
    tpu.vector_store %arg3[%c0_450, %c32_451, %c44_452], %299 {strides = array<i32>} : memref<1x64x48xf32, #tpu.memory_space<vmem>>, vector<1x8x4xf32>,
    %c0_453 = arith.constant 0 : index
    %c0_454 = arith.constant 0 : index
    %c20_455 = arith.constant 20 : index
    %c0_456 = arith.constant 0 : index
    %c0_457 = arith.constant 0 : index
    %300 = vector.load %arg2[%c0_453, %c0_454, %c20_455, %c0_456, %c0_457] : memref<1x3x32x8x4xf32, #tpu.memory_space<vmem>>, vector<1x1x1x8x4xf32>
    %301 = vector.shape_cast %300 : vector<1x1x1x8x4xf32> to vector<8x4xf32>
    %c0_458 = arith.constant 0 : index
    %c40_459 = arith.constant 40 : index
    %c0_460 = arith.constant 0 : index
    %302 = vector.load %arg3[%c0_458, %c40_459, %c0_460] : memref<1x64x48xf32, #tpu.memory_space<vmem>>, vector<1x8x4xf32>
    %303 = vector.shape_cast %302 : vector<1x8x4xf32> to vector<8x4xf32>
    %304 = vector.shape_cast %301 : vector<8x4xf32> to vector<1x8x4xf32>
    tpu.vector_store %arg3[%c0_458, %c40_459, %c0_460], %304 {strides = array<i32>} : memref<1x64x48xf32, #tpu.memory_space<vmem>>, vector<1x8x4xf32>,
    %c0_461 = arith.constant 0 : index
    %c0_462 = arith.constant 0 : index
    %c21 = arith.constant 21 : index
    %c0_463 = arith.constant 0 : index
    %c0_464 = arith.constant 0 : index
    %305 = vector.load %arg2[%c0_461, %c0_462, %c21, %c0_463, %c0_464] : memref<1x3x32x8x4xf32, #tpu.memory_space<vmem>>, vector<1x1x1x8x4xf32>
    %306 = vector.shape_cast %305 : vector<1x1x1x8x4xf32> to vector<8x4xf32>
    %c0_465 = arith.constant 0 : index
    %c40_466 = arith.constant 40 : index
    %c4_467 = arith.constant 4 : index
    %307 = vector.load %arg3[%c0_465, %c40_466, %c4_467] : memref<1x64x48xf32, #tpu.memory_space<vmem>>, vector<1x8x4xf32>
    %308 = vector.shape_cast %307 : vector<1x8x4xf32> to vector<8x4xf32>
    %309 = vector.shape_cast %306 : vector<8x4xf32> to vector<1x8x4xf32>
    tpu.vector_store %arg3[%c0_465, %c40_466, %c4_467], %309 {strides = array<i32>} : memref<1x64x48xf32, #tpu.memory_space<vmem>>, vector<1x8x4xf32>,
    %c0_468 = arith.constant 0 : index
    %c0_469 = arith.constant 0 : index
    %c22 = arith.constant 22 : index
    %c0_470 = arith.constant 0 : index
    %c0_471 = arith.constant 0 : index
    %310 = vector.load %arg2[%c0_468, %c0_469, %c22, %c0_470, %c0_471] : memref<1x3x32x8x4xf32, #tpu.memory_space<vmem>>, vector<1x1x1x8x4xf32>
    %311 = vector.shape_cast %310 : vector<1x1x1x8x4xf32> to vector<8x4xf32>
    %c0_472 = arith.constant 0 : index
    %c40_473 = arith.constant 40 : index
    %c8_474 = arith.constant 8 : index
    %312 = vector.load %arg3[%c0_472, %c40_473, %c8_474] : memref<1x64x48xf32, #tpu.memory_space<vmem>>, vector<1x8x4xf32>
    %313 = vector.shape_cast %312 : vector<1x8x4xf32> to vector<8x4xf32>
    %314 = vector.shape_cast %311 : vector<8x4xf32> to vector<1x8x4xf32>
    tpu.vector_store %arg3[%c0_472, %c40_473, %c8_474], %314 {strides = array<i32>} : memref<1x64x48xf32, #tpu.memory_space<vmem>>, vector<1x8x4xf32>,
    %c0_475 = arith.constant 0 : index
    %c0_476 = arith.constant 0 : index
    %c23 = arith.constant 23 : index
    %c0_477 = arith.constant 0 : index
    %c0_478 = arith.constant 0 : index
    %315 = vector.load %arg2[%c0_475, %c0_476, %c23, %c0_477, %c0_478] : memref<1x3x32x8x4xf32, #tpu.memory_space<vmem>>, vector<1x1x1x8x4xf32>
    %316 = vector.shape_cast %315 : vector<1x1x1x8x4xf32> to vector<8x4xf32>
    %c0_479 = arith.constant 0 : index
    %c40_480 = arith.constant 40 : index
    %c12_481 = arith.constant 12 : index
    %317 = vector.load %arg3[%c0_479, %c40_480, %c12_481] : memref<1x64x48xf32, #tpu.memory_space<vmem>>, vector<1x8x4xf32>
    %318 = vector.shape_cast %317 : vector<1x8x4xf32> to vector<8x4xf32>
    %319 = vector.shape_cast %316 : vector<8x4xf32> to vector<1x8x4xf32>
    tpu.vector_store %arg3[%c0_479, %c40_480, %c12_481], %319 {strides = array<i32>} : memref<1x64x48xf32, #tpu.memory_space<vmem>>, vector<1x8x4xf32>,
    %c0_482 = arith.constant 0 : index
    %c1_483 = arith.constant 1 : index
    %c20_484 = arith.constant 20 : index
    %c0_485 = arith.constant 0 : index
    %c0_486 = arith.constant 0 : index
    %320 = vector.load %arg2[%c0_482, %c1_483, %c20_484, %c0_485, %c0_486] : memref<1x3x32x8x4xf32, #tpu.memory_space<vmem>>, vector<1x1x1x8x4xf32>
    %321 = vector.shape_cast %320 : vector<1x1x1x8x4xf32> to vector<8x4xf32>
    %c0_487 = arith.constant 0 : index
    %c40_488 = arith.constant 40 : index
    %c16_489 = arith.constant 16 : index
    %322 = vector.load %arg3[%c0_487, %c40_488, %c16_489] : memref<1x64x48xf32, #tpu.memory_space<vmem>>, vector<1x8x4xf32>
    %323 = vector.shape_cast %322 : vector<1x8x4xf32> to vector<8x4xf32>
    %324 = vector.shape_cast %321 : vector<8x4xf32> to vector<1x8x4xf32>
    tpu.vector_store %arg3[%c0_487, %c40_488, %c16_489], %324 {strides = array<i32>} : memref<1x64x48xf32, #tpu.memory_space<vmem>>, vector<1x8x4xf32>,
    %c0_490 = arith.constant 0 : index
    %c1_491 = arith.constant 1 : index
    %c21_492 = arith.constant 21 : index
    %c0_493 = arith.constant 0 : index
    %c0_494 = arith.constant 0 : index
    %325 = vector.load %arg2[%c0_490, %c1_491, %c21_492, %c0_493, %c0_494] : memref<1x3x32x8x4xf32, #tpu.memory_space<vmem>>, vector<1x1x1x8x4xf32>
    %326 = vector.shape_cast %325 : vector<1x1x1x8x4xf32> to vector<8x4xf32>
    %c0_495 = arith.constant 0 : index
    %c40_496 = arith.constant 40 : index
    %c20_497 = arith.constant 20 : index
    %327 = vector.load %arg3[%c0_495, %c40_496, %c20_497] : memref<1x64x48xf32, #tpu.memory_space<vmem>>, vector<1x8x4xf32>
    %328 = vector.shape_cast %327 : vector<1x8x4xf32> to vector<8x4xf32>
    %329 = vector.shape_cast %326 : vector<8x4xf32> to vector<1x8x4xf32>
    tpu.vector_store %arg3[%c0_495, %c40_496, %c20_497], %329 {strides = array<i32>} : memref<1x64x48xf32, #tpu.memory_space<vmem>>, vector<1x8x4xf32>,
    %c0_498 = arith.constant 0 : index
    %c1_499 = arith.constant 1 : index
    %c22_500 = arith.constant 22 : index
    %c0_501 = arith.constant 0 : index
    %c0_502 = arith.constant 0 : index
    %330 = vector.load %arg2[%c0_498, %c1_499, %c22_500, %c0_501, %c0_502] : memref<1x3x32x8x4xf32, #tpu.memory_space<vmem>>, vector<1x1x1x8x4xf32>
    %331 = vector.shape_cast %330 : vector<1x1x1x8x4xf32> to vector<8x4xf32>
    %c0_503 = arith.constant 0 : index
    %c40_504 = arith.constant 40 : index
    %c24_505 = arith.constant 24 : index
    %332 = vector.load %arg3[%c0_503, %c40_504, %c24_505] : memref<1x64x48xf32, #tpu.memory_space<vmem>>, vector<1x8x4xf32>
    %333 = vector.shape_cast %332 : vector<1x8x4xf32> to vector<8x4xf32>
    %334 = vector.shape_cast %331 : vector<8x4xf32> to vector<1x8x4xf32>
    tpu.vector_store %arg3[%c0_503, %c40_504, %c24_505], %334 {strides = array<i32>} : memref<1x64x48xf32, #tpu.memory_space<vmem>>, vector<1x8x4xf32>,
    %c0_506 = arith.constant 0 : index
    %c1_507 = arith.constant 1 : index
    %c23_508 = arith.constant 23 : index
    %c0_509 = arith.constant 0 : index
    %c0_510 = arith.constant 0 : index
    %335 = vector.load %arg2[%c0_506, %c1_507, %c23_508, %c0_509, %c0_510] : memref<1x3x32x8x4xf32, #tpu.memory_space<vmem>>, vector<1x1x1x8x4xf32>
    %336 = vector.shape_cast %335 : vector<1x1x1x8x4xf32> to vector<8x4xf32>
    %c0_511 = arith.constant 0 : index
    %c40_512 = arith.constant 40 : index
    %c28_513 = arith.constant 28 : index
    %337 = vector.load %arg3[%c0_511, %c40_512, %c28_513] : memref<1x64x48xf32, #tpu.memory_space<vmem>>, vector<1x8x4xf32>
    %338 = vector.shape_cast %337 : vector<1x8x4xf32> to vector<8x4xf32>
    %339 = vector.shape_cast %336 : vector<8x4xf32> to vector<1x8x4xf32>
    tpu.vector_store %arg3[%c0_511, %c40_512, %c28_513], %339 {strides = array<i32>} : memref<1x64x48xf32, #tpu.memory_space<vmem>>, vector<1x8x4xf32>,
    %c0_514 = arith.constant 0 : index
    %c2_515 = arith.constant 2 : index
    %c20_516 = arith.constant 20 : index
    %c0_517 = arith.constant 0 : index
    %c0_518 = arith.constant 0 : index
    %340 = vector.load %arg2[%c0_514, %c2_515, %c20_516, %c0_517, %c0_518] : memref<1x3x32x8x4xf32, #tpu.memory_space<vmem>>, vector<1x1x1x8x4xf32>
    %341 = vector.shape_cast %340 : vector<1x1x1x8x4xf32> to vector<8x4xf32>
    %c0_519 = arith.constant 0 : index
    %c40_520 = arith.constant 40 : index
    %c32_521 = arith.constant 32 : index
    %342 = vector.load %arg3[%c0_519, %c40_520, %c32_521] : memref<1x64x48xf32, #tpu.memory_space<vmem>>, vector<1x8x4xf32>
    %343 = vector.shape_cast %342 : vector<1x8x4xf32> to vector<8x4xf32>
    %344 = vector.shape_cast %341 : vector<8x4xf32> to vector<1x8x4xf32>
    tpu.vector_store %arg3[%c0_519, %c40_520, %c32_521], %344 {strides = array<i32>} : memref<1x64x48xf32, #tpu.memory_space<vmem>>, vector<1x8x4xf32>,
    %c0_522 = arith.constant 0 : index
    %c2_523 = arith.constant 2 : index
    %c21_524 = arith.constant 21 : index
    %c0_525 = arith.constant 0 : index
    %c0_526 = arith.constant 0 : index
    %345 = vector.load %arg2[%c0_522, %c2_523, %c21_524, %c0_525, %c0_526] : memref<1x3x32x8x4xf32, #tpu.memory_space<vmem>>, vector<1x1x1x8x4xf32>
    %346 = vector.shape_cast %345 : vector<1x1x1x8x4xf32> to vector<8x4xf32>
    %c0_527 = arith.constant 0 : index
    %c40_528 = arith.constant 40 : index
    %c36_529 = arith.constant 36 : index
    %347 = vector.load %arg3[%c0_527, %c40_528, %c36_529] : memref<1x64x48xf32, #tpu.memory_space<vmem>>, vector<1x8x4xf32>
    %348 = vector.shape_cast %347 : vector<1x8x4xf32> to vector<8x4xf32>
    %349 = vector.shape_cast %346 : vector<8x4xf32> to vector<1x8x4xf32>
    tpu.vector_store %arg3[%c0_527, %c40_528, %c36_529], %349 {strides = array<i32>} : memref<1x64x48xf32, #tpu.memory_space<vmem>>, vector<1x8x4xf32>,
    %c0_530 = arith.constant 0 : index
    %c2_531 = arith.constant 2 : index
    %c22_532 = arith.constant 22 : index
    %c0_533 = arith.constant 0 : index
    %c0_534 = arith.constant 0 : index
    %350 = vector.load %arg2[%c0_530, %c2_531, %c22_532, %c0_533, %c0_534] : memref<1x3x32x8x4xf32, #tpu.memory_space<vmem>>, vector<1x1x1x8x4xf32>
    %351 = vector.shape_cast %350 : vector<1x1x1x8x4xf32> to vector<8x4xf32>
    %c0_535 = arith.constant 0 : index
    %c40_536 = arith.constant 40 : index
    %c40_537 = arith.constant 40 : index
    %352 = vector.load %arg3[%c0_535, %c40_536, %c40_537] : memref<1x64x48xf32, #tpu.memory_space<vmem>>, vector<1x8x4xf32>
    %353 = vector.shape_cast %352 : vector<1x8x4xf32> to vector<8x4xf32>
    %354 = vector.shape_cast %351 : vector<8x4xf32> to vector<1x8x4xf32>
    tpu.vector_store %arg3[%c0_535, %c40_536, %c40_537], %354 {strides = array<i32>} : memref<1x64x48xf32, #tpu.memory_space<vmem>>, vector<1x8x4xf32>,
    %c0_538 = arith.constant 0 : index
    %c2_539 = arith.constant 2 : index
    %c23_540 = arith.constant 23 : index
    %c0_541 = arith.constant 0 : index
    %c0_542 = arith.constant 0 : index
    %355 = vector.load %arg2[%c0_538, %c2_539, %c23_540, %c0_541, %c0_542] : memref<1x3x32x8x4xf32, #tpu.memory_space<vmem>>, vector<1x1x1x8x4xf32>
    %356 = vector.shape_cast %355 : vector<1x1x1x8x4xf32> to vector<8x4xf32>
    %c0_543 = arith.constant 0 : index
    %c40_544 = arith.constant 40 : index
    %c44_545 = arith.constant 44 : index
    %357 = vector.load %arg3[%c0_543, %c40_544, %c44_545] : memref<1x64x48xf32, #tpu.memory_space<vmem>>, vector<1x8x4xf32>
    %358 = vector.shape_cast %357 : vector<1x8x4xf32> to vector<8x4xf32>
    %359 = vector.shape_cast %356 : vector<8x4xf32> to vector<1x8x4xf32>
    tpu.vector_store %arg3[%c0_543, %c40_544, %c44_545], %359 {strides = array<i32>} : memref<1x64x48xf32, #tpu.memory_space<vmem>>, vector<1x8x4xf32>,
    %c0_546 = arith.constant 0 : index
    %c0_547 = arith.constant 0 : index
    %c24_548 = arith.constant 24 : index
    %c0_549 = arith.constant 0 : index
    %c0_550 = arith.constant 0 : index
    %360 = vector.load %arg2[%c0_546, %c0_547, %c24_548, %c0_549, %c0_550] : memref<1x3x32x8x4xf32, #tpu.memory_space<vmem>>, vector<1x1x1x8x4xf32>
    %361 = vector.shape_cast %360 : vector<1x1x1x8x4xf32> to vector<8x4xf32>
    %c0_551 = arith.constant 0 : index
    %c48 = arith.constant 48 : index
    %c0_552 = arith.constant 0 : index
    %362 = vector.load %arg3[%c0_551, %c48, %c0_552] : memref<1x64x48xf32, #tpu.memory_space<vmem>>, vector<1x8x4xf32>
    %363 = vector.shape_cast %362 : vector<1x8x4xf32> to vector<8x4xf32>
    %364 = vector.shape_cast %361 : vector<8x4xf32> to vector<1x8x4xf32>
    tpu.vector_store %arg3[%c0_551, %c48, %c0_552], %364 {strides = array<i32>} : memref<1x64x48xf32, #tpu.memory_space<vmem>>, vector<1x8x4xf32>,
    %c0_553 = arith.constant 0 : index
    %c0_554 = arith.constant 0 : index
    %c25 = arith.constant 25 : index
    %c0_555 = arith.constant 0 : index
    %c0_556 = arith.constant 0 : index
    %365 = vector.load %arg2[%c0_553, %c0_554, %c25, %c0_555, %c0_556] : memref<1x3x32x8x4xf32, #tpu.memory_space<vmem>>, vector<1x1x1x8x4xf32>
    %366 = vector.shape_cast %365 : vector<1x1x1x8x4xf32> to vector<8x4xf32>
    %c0_557 = arith.constant 0 : index
    %c48_558 = arith.constant 48 : index
    %c4_559 = arith.constant 4 : index
    %367 = vector.load %arg3[%c0_557, %c48_558, %c4_559] : memref<1x64x48xf32, #tpu.memory_space<vmem>>, vector<1x8x4xf32>
    %368 = vector.shape_cast %367 : vector<1x8x4xf32> to vector<8x4xf32>
    %369 = vector.shape_cast %366 : vector<8x4xf32> to vector<1x8x4xf32>
    tpu.vector_store %arg3[%c0_557, %c48_558, %c4_559], %369 {strides = array<i32>} : memref<1x64x48xf32, #tpu.memory_space<vmem>>, vector<1x8x4xf32>,
    %c0_560 = arith.constant 0 : index
    %c0_561 = arith.constant 0 : index
    %c26 = arith.constant 26 : index
    %c0_562 = arith.constant 0 : index
    %c0_563 = arith.constant 0 : index
    %370 = vector.load %arg2[%c0_560, %c0_561, %c26, %c0_562, %c0_563] : memref<1x3x32x8x4xf32, #tpu.memory_space<vmem>>, vector<1x1x1x8x4xf32>
    %371 = vector.shape_cast %370 : vector<1x1x1x8x4xf32> to vector<8x4xf32>
    %c0_564 = arith.constant 0 : index
    %c48_565 = arith.constant 48 : index
    %c8_566 = arith.constant 8 : index
    %372 = vector.load %arg3[%c0_564, %c48_565, %c8_566] : memref<1x64x48xf32, #tpu.memory_space<vmem>>, vector<1x8x4xf32>
    %373 = vector.shape_cast %372 : vector<1x8x4xf32> to vector<8x4xf32>
    %374 = vector.shape_cast %371 : vector<8x4xf32> to vector<1x8x4xf32>
    tpu.vector_store %arg3[%c0_564, %c48_565, %c8_566], %374 {strides = array<i32>} : memref<1x64x48xf32, #tpu.memory_space<vmem>>, vector<1x8x4xf32>,
    %c0_567 = arith.constant 0 : index
    %c0_568 = arith.constant 0 : index
    %c27 = arith.constant 27 : index
    %c0_569 = arith.constant 0 : index
    %c0_570 = arith.constant 0 : index
    %375 = vector.load %arg2[%c0_567, %c0_568, %c27, %c0_569, %c0_570] : memref<1x3x32x8x4xf32, #tpu.memory_space<vmem>>, vector<1x1x1x8x4xf32>
    %376 = vector.shape_cast %375 : vector<1x1x1x8x4xf32> to vector<8x4xf32>
    %c0_571 = arith.constant 0 : index
    %c48_572 = arith.constant 48 : index
    %c12_573 = arith.constant 12 : index
    %377 = vector.load %arg3[%c0_571, %c48_572, %c12_573] : memref<1x64x48xf32, #tpu.memory_space<vmem>>, vector<1x8x4xf32>
    %378 = vector.shape_cast %377 : vector<1x8x4xf32> to vector<8x4xf32>
    %379 = vector.shape_cast %376 : vector<8x4xf32> to vector<1x8x4xf32>
    tpu.vector_store %arg3[%c0_571, %c48_572, %c12_573], %379 {strides = array<i32>} : memref<1x64x48xf32, #tpu.memory_space<vmem>>, vector<1x8x4xf32>,
    %c0_574 = arith.constant 0 : index
    %c1_575 = arith.constant 1 : index
    %c24_576 = arith.constant 24 : index
    %c0_577 = arith.constant 0 : index
    %c0_578 = arith.constant 0 : index
    %380 = vector.load %arg2[%c0_574, %c1_575, %c24_576, %c0_577, %c0_578] : memref<1x3x32x8x4xf32, #tpu.memory_space<vmem>>, vector<1x1x1x8x4xf32>
    %381 = vector.shape_cast %380 : vector<1x1x1x8x4xf32> to vector<8x4xf32>
    %c0_579 = arith.constant 0 : index
    %c48_580 = arith.constant 48 : index
    %c16_581 = arith.constant 16 : index
    %382 = vector.load %arg3[%c0_579, %c48_580, %c16_581] : memref<1x64x48xf32, #tpu.memory_space<vmem>>, vector<1x8x4xf32>
    %383 = vector.shape_cast %382 : vector<1x8x4xf32> to vector<8x4xf32>
    %384 = vector.shape_cast %381 : vector<8x4xf32> to vector<1x8x4xf32>
    tpu.vector_store %arg3[%c0_579, %c48_580, %c16_581], %384 {strides = array<i32>} : memref<1x64x48xf32, #tpu.memory_space<vmem>>, vector<1x8x4xf32>,
    %c0_582 = arith.constant 0 : index
    %c1_583 = arith.constant 1 : index
    %c25_584 = arith.constant 25 : index
    %c0_585 = arith.constant 0 : index
    %c0_586 = arith.constant 0 : index
    %385 = vector.load %arg2[%c0_582, %c1_583, %c25_584, %c0_585, %c0_586] : memref<1x3x32x8x4xf32, #tpu.memory_space<vmem>>, vector<1x1x1x8x4xf32>
    %386 = vector.shape_cast %385 : vector<1x1x1x8x4xf32> to vector<8x4xf32>
    %c0_587 = arith.constant 0 : index
    %c48_588 = arith.constant 48 : index
    %c20_589 = arith.constant 20 : index
    %387 = vector.load %arg3[%c0_587, %c48_588, %c20_589] : memref<1x64x48xf32, #tpu.memory_space<vmem>>, vector<1x8x4xf32>
    %388 = vector.shape_cast %387 : vector<1x8x4xf32> to vector<8x4xf32>
    %389 = vector.shape_cast %386 : vector<8x4xf32> to vector<1x8x4xf32>
    tpu.vector_store %arg3[%c0_587, %c48_588, %c20_589], %389 {strides = array<i32>} : memref<1x64x48xf32, #tpu.memory_space<vmem>>, vector<1x8x4xf32>,
    %c0_590 = arith.constant 0 : index
    %c1_591 = arith.constant 1 : index
    %c26_592 = arith.constant 26 : index
    %c0_593 = arith.constant 0 : index
    %c0_594 = arith.constant 0 : index
    %390 = vector.load %arg2[%c0_590, %c1_591, %c26_592, %c0_593, %c0_594] : memref<1x3x32x8x4xf32, #tpu.memory_space<vmem>>, vector<1x1x1x8x4xf32>
    %391 = vector.shape_cast %390 : vector<1x1x1x8x4xf32> to vector<8x4xf32>
    %c0_595 = arith.constant 0 : index
    %c48_596 = arith.constant 48 : index
    %c24_597 = arith.constant 24 : index
    %392 = vector.load %arg3[%c0_595, %c48_596, %c24_597] : memref<1x64x48xf32, #tpu.memory_space<vmem>>, vector<1x8x4xf32>
    %393 = vector.shape_cast %392 : vector<1x8x4xf32> to vector<8x4xf32>
    %394 = vector.shape_cast %391 : vector<8x4xf32> to vector<1x8x4xf32>
    tpu.vector_store %arg3[%c0_595, %c48_596, %c24_597], %394 {strides = array<i32>} : memref<1x64x48xf32, #tpu.memory_space<vmem>>, vector<1x8x4xf32>,
    %c0_598 = arith.constant 0 : index
    %c1_599 = arith.constant 1 : index
    %c27_600 = arith.constant 27 : index
    %c0_601 = arith.constant 0 : index
    %c0_602 = arith.constant 0 : index
    %395 = vector.load %arg2[%c0_598, %c1_599, %c27_600, %c0_601, %c0_602] : memref<1x3x32x8x4xf32, #tpu.memory_space<vmem>>, vector<1x1x1x8x4xf32>
    %396 = vector.shape_cast %395 : vector<1x1x1x8x4xf32> to vector<8x4xf32>
    %c0_603 = arith.constant 0 : index
    %c48_604 = arith.constant 48 : index
    %c28_605 = arith.constant 28 : index
    %397 = vector.load %arg3[%c0_603, %c48_604, %c28_605] : memref<1x64x48xf32, #tpu.memory_space<vmem>>, vector<1x8x4xf32>
    %398 = vector.shape_cast %397 : vector<1x8x4xf32> to vector<8x4xf32>
    %399 = vector.shape_cast %396 : vector<8x4xf32> to vector<1x8x4xf32>
    tpu.vector_store %arg3[%c0_603, %c48_604, %c28_605], %399 {strides = array<i32>} : memref<1x64x48xf32, #tpu.memory_space<vmem>>, vector<1x8x4xf32>,
    %c0_606 = arith.constant 0 : index
    %c2_607 = arith.constant 2 : index
    %c24_608 = arith.constant 24 : index
    %c0_609 = arith.constant 0 : index
    %c0_610 = arith.constant 0 : index
    %400 = vector.load %arg2[%c0_606, %c2_607, %c24_608, %c0_609, %c0_610] : memref<1x3x32x8x4xf32, #tpu.memory_space<vmem>>, vector<1x1x1x8x4xf32>
    %401 = vector.shape_cast %400 : vector<1x1x1x8x4xf32> to vector<8x4xf32>
    %c0_611 = arith.constant 0 : index
    %c48_612 = arith.constant 48 : index
    %c32_613 = arith.constant 32 : index
    %402 = vector.load %arg3[%c0_611, %c48_612, %c32_613] : memref<1x64x48xf32, #tpu.memory_space<vmem>>, vector<1x8x4xf32>
    %403 = vector.shape_cast %402 : vector<1x8x4xf32> to vector<8x4xf32>
    %404 = vector.shape_cast %401 : vector<8x4xf32> to vector<1x8x4xf32>
    tpu.vector_store %arg3[%c0_611, %c48_612, %c32_613], %404 {strides = array<i32>} : memref<1x64x48xf32, #tpu.memory_space<vmem>>, vector<1x8x4xf32>,
    %c0_614 = arith.constant 0 : index
    %c2_615 = arith.constant 2 : index
    %c25_616 = arith.constant 25 : index
    %c0_617 = arith.constant 0 : index
    %c0_618 = arith.constant 0 : index
    %405 = vector.load %arg2[%c0_614, %c2_615, %c25_616, %c0_617, %c0_618] : memref<1x3x32x8x4xf32, #tpu.memory_space<vmem>>, vector<1x1x1x8x4xf32>
    %406 = vector.shape_cast %405 : vector<1x1x1x8x4xf32> to vector<8x4xf32>
    %c0_619 = arith.constant 0 : index
    %c48_620 = arith.constant 48 : index
    %c36_621 = arith.constant 36 : index
    %407 = vector.load %arg3[%c0_619, %c48_620, %c36_621] : memref<1x64x48xf32, #tpu.memory_space<vmem>>, vector<1x8x4xf32>
    %408 = vector.shape_cast %407 : vector<1x8x4xf32> to vector<8x4xf32>
    %409 = vector.shape_cast %406 : vector<8x4xf32> to vector<1x8x4xf32>
    tpu.vector_store %arg3[%c0_619, %c48_620, %c36_621], %409 {strides = array<i32>} : memref<1x64x48xf32, #tpu.memory_space<vmem>>, vector<1x8x4xf32>,
    %c0_622 = arith.constant 0 : index
    %c2_623 = arith.constant 2 : index
    %c26_624 = arith.constant 26 : index
    %c0_625 = arith.constant 0 : index
    %c0_626 = arith.constant 0 : index
    %410 = vector.load %arg2[%c0_622, %c2_623, %c26_624, %c0_625, %c0_626] : memref<1x3x32x8x4xf32, #tpu.memory_space<vmem>>, vector<1x1x1x8x4xf32>
    %411 = vector.shape_cast %410 : vector<1x1x1x8x4xf32> to vector<8x4xf32>
    %c0_627 = arith.constant 0 : index
    %c48_628 = arith.constant 48 : index
    %c40_629 = arith.constant 40 : index
    %412 = vector.load %arg3[%c0_627, %c48_628, %c40_629] : memref<1x64x48xf32, #tpu.memory_space<vmem>>, vector<1x8x4xf32>
    %413 = vector.shape_cast %412 : vector<1x8x4xf32> to vector<8x4xf32>
    %414 = vector.shape_cast %411 : vector<8x4xf32> to vector<1x8x4xf32>
    tpu.vector_store %arg3[%c0_627, %c48_628, %c40_629], %414 {strides = array<i32>} : memref<1x64x48xf32, #tpu.memory_space<vmem>>, vector<1x8x4xf32>,
    %c0_630 = arith.constant 0 : index
    %c2_631 = arith.constant 2 : index
    %c27_632 = arith.constant 27 : index
    %c0_633 = arith.constant 0 : index
    %c0_634 = arith.constant 0 : index
    %415 = vector.load %arg2[%c0_630, %c2_631, %c27_632, %c0_633, %c0_634] : memref<1x3x32x8x4xf32, #tpu.memory_space<vmem>>, vector<1x1x1x8x4xf32>
    %416 = vector.shape_cast %415 : vector<1x1x1x8x4xf32> to vector<8x4xf32>
    %c0_635 = arith.constant 0 : index
    %c48_636 = arith.constant 48 : index
    %c44_637 = arith.constant 44 : index
    %417 = vector.load %arg3[%c0_635, %c48_636, %c44_637] : memref<1x64x48xf32, #tpu.memory_space<vmem>>, vector<1x8x4xf32>
    %418 = vector.shape_cast %417 : vector<1x8x4xf32> to vector<8x4xf32>
    %419 = vector.shape_cast %416 : vector<8x4xf32> to vector<1x8x4xf32>
    tpu.vector_store %arg3[%c0_635, %c48_636, %c44_637], %419 {strides = array<i32>} : memref<1x64x48xf32, #tpu.memory_space<vmem>>, vector<1x8x4xf32>,
    %c0_638 = arith.constant 0 : index
    %c0_639 = arith.constant 0 : index
    %c28_640 = arith.constant 28 : index
    %c0_641 = arith.constant 0 : index
    %c0_642 = arith.constant 0 : index
    %420 = vector.load %arg2[%c0_638, %c0_639, %c28_640, %c0_641, %c0_642] : memref<1x3x32x8x4xf32, #tpu.memory_space<vmem>>, vector<1x1x1x8x4xf32>
    %421 = vector.shape_cast %420 : vector<1x1x1x8x4xf32> to vector<8x4xf32>
    %c0_643 = arith.constant 0 : index
    %c56 = arith.constant 56 : index
    %c0_644 = arith.constant 0 : index
    %422 = vector.load %arg3[%c0_643, %c56, %c0_644] : memref<1x64x48xf32, #tpu.memory_space<vmem>>, vector<1x8x4xf32>
    %423 = vector.shape_cast %422 : vector<1x8x4xf32> to vector<8x4xf32>
    %424 = vector.shape_cast %421 : vector<8x4xf32> to vector<1x8x4xf32>
    tpu.vector_store %arg3[%c0_643, %c56, %c0_644], %424 {strides = array<i32>} : memref<1x64x48xf32, #tpu.memory_space<vmem>>, vector<1x8x4xf32>,
    %c0_645 = arith.constant 0 : index
    %c0_646 = arith.constant 0 : index
    %c29 = arith.constant 29 : index
    %c0_647 = arith.constant 0 : index
    %c0_648 = arith.constant 0 : index
    %425 = vector.load %arg2[%c0_645, %c0_646, %c29, %c0_647, %c0_648] : memref<1x3x32x8x4xf32, #tpu.memory_space<vmem>>, vector<1x1x1x8x4xf32>
    %426 = vector.shape_cast %425 : vector<1x1x1x8x4xf32> to vector<8x4xf32>
    %c0_649 = arith.constant 0 : index
    %c56_650 = arith.constant 56 : index
    %c4_651 = arith.constant 4 : index
    %427 = vector.load %arg3[%c0_649, %c56_650, %c4_651] : memref<1x64x48xf32, #tpu.memory_space<vmem>>, vector<1x8x4xf32>
    %428 = vector.shape_cast %427 : vector<1x8x4xf32> to vector<8x4xf32>
    %429 = vector.shape_cast %426 : vector<8x4xf32> to vector<1x8x4xf32>
    tpu.vector_store %arg3[%c0_649, %c56_650, %c4_651], %429 {strides = array<i32>} : memref<1x64x48xf32, #tpu.memory_space<vmem>>, vector<1x8x4xf32>,
    %c0_652 = arith.constant 0 : index
    %c0_653 = arith.constant 0 : index
    %c30 = arith.constant 30 : index
    %c0_654 = arith.constant 0 : index
    %c0_655 = arith.constant 0 : index
    %430 = vector.load %arg2[%c0_652, %c0_653, %c30, %c0_654, %c0_655] : memref<1x3x32x8x4xf32, #tpu.memory_space<vmem>>, vector<1x1x1x8x4xf32>
    %431 = vector.shape_cast %430 : vector<1x1x1x8x4xf32> to vector<8x4xf32>
    %c0_656 = arith.constant 0 : index
    %c56_657 = arith.constant 56 : index
    %c8_658 = arith.constant 8 : index
    %432 = vector.load %arg3[%c0_656, %c56_657, %c8_658] : memref<1x64x48xf32, #tpu.memory_space<vmem>>, vector<1x8x4xf32>
    %433 = vector.shape_cast %432 : vector<1x8x4xf32> to vector<8x4xf32>
    %434 = vector.shape_cast %431 : vector<8x4xf32> to vector<1x8x4xf32>
    tpu.vector_store %arg3[%c0_656, %c56_657, %c8_658], %434 {strides = array<i32>} : memref<1x64x48xf32, #tpu.memory_space<vmem>>, vector<1x8x4xf32>,
    %c0_659 = arith.constant 0 : index
    %c0_660 = arith.constant 0 : index
    %c31 = arith.constant 31 : index
    %c0_661 = arith.constant 0 : index
    %c0_662 = arith.constant 0 : index
    %435 = vector.load %arg2[%c0_659, %c0_660, %c31, %c0_661, %c0_662] : memref<1x3x32x8x4xf32, #tpu.memory_space<vmem>>, vector<1x1x1x8x4xf32>
    %436 = vector.shape_cast %435 : vector<1x1x1x8x4xf32> to vector<8x4xf32>
    %c0_663 = arith.constant 0 : index
    %c56_664 = arith.constant 56 : index
    %c12_665 = arith.constant 12 : index
    %437 = vector.load %arg3[%c0_663, %c56_664, %c12_665] : memref<1x64x48xf32, #tpu.memory_space<vmem>>, vector<1x8x4xf32>
    %438 = vector.shape_cast %437 : vector<1x8x4xf32> to vector<8x4xf32>
    %439 = vector.shape_cast %436 : vector<8x4xf32> to vector<1x8x4xf32>
    tpu.vector_store %arg3[%c0_663, %c56_664, %c12_665], %439 {strides = array<i32>} : memref<1x64x48xf32, #tpu.memory_space<vmem>>, vector<1x8x4xf32>,
    %c0_666 = arith.constant 0 : index
    %c1_667 = arith.constant 1 : index
    %c28_668 = arith.constant 28 : index
    %c0_669 = arith.constant 0 : index
    %c0_670 = arith.constant 0 : index
    %440 = vector.load %arg2[%c0_666, %c1_667, %c28_668, %c0_669, %c0_670] : memref<1x3x32x8x4xf32, #tpu.memory_space<vmem>>, vector<1x1x1x8x4xf32>
    %441 = vector.shape_cast %440 : vector<1x1x1x8x4xf32> to vector<8x4xf32>
    %c0_671 = arith.constant 0 : index
    %c56_672 = arith.constant 56 : index
    %c16_673 = arith.constant 16 : index
    %442 = vector.load %arg3[%c0_671, %c56_672, %c16_673] : memref<1x64x48xf32, #tpu.memory_space<vmem>>, vector<1x8x4xf32>
    %443 = vector.shape_cast %442 : vector<1x8x4xf32> to vector<8x4xf32>
    %444 = vector.shape_cast %441 : vector<8x4xf32> to vector<1x8x4xf32>
    tpu.vector_store %arg3[%c0_671, %c56_672, %c16_673], %444 {strides = array<i32>} : memref<1x64x48xf32, #tpu.memory_space<vmem>>, vector<1x8x4xf32>,
    %c0_674 = arith.constant 0 : index
    %c1_675 = arith.constant 1 : index
    %c29_676 = arith.constant 29 : index
    %c0_677 = arith.constant 0 : index
    %c0_678 = arith.constant 0 : index
    %445 = vector.load %arg2[%c0_674, %c1_675, %c29_676, %c0_677, %c0_678] : memref<1x3x32x8x4xf32, #tpu.memory_space<vmem>>, vector<1x1x1x8x4xf32>
    %446 = vector.shape_cast %445 : vector<1x1x1x8x4xf32> to vector<8x4xf32>
    %c0_679 = arith.constant 0 : index
    %c56_680 = arith.constant 56 : index
    %c20_681 = arith.constant 20 : index
    %447 = vector.load %arg3[%c0_679, %c56_680, %c20_681] : memref<1x64x48xf32, #tpu.memory_space<vmem>>, vector<1x8x4xf32>
    %448 = vector.shape_cast %447 : vector<1x8x4xf32> to vector<8x4xf32>
    %449 = vector.shape_cast %446 : vector<8x4xf32> to vector<1x8x4xf32>
    tpu.vector_store %arg3[%c0_679, %c56_680, %c20_681], %449 {strides = array<i32>} : memref<1x64x48xf32, #tpu.memory_space<vmem>>, vector<1x8x4xf32>,
    %c0_682 = arith.constant 0 : index
    %c1_683 = arith.constant 1 : index
    %c30_684 = arith.constant 30 : index
    %c0_685 = arith.constant 0 : index
    %c0_686 = arith.constant 0 : index
    %450 = vector.load %arg2[%c0_682, %c1_683, %c30_684, %c0_685, %c0_686] : memref<1x3x32x8x4xf32, #tpu.memory_space<vmem>>, vector<1x1x1x8x4xf32>
    %451 = vector.shape_cast %450 : vector<1x1x1x8x4xf32> to vector<8x4xf32>
    %c0_687 = arith.constant 0 : index
    %c56_688 = arith.constant 56 : index
    %c24_689 = arith.constant 24 : index
    %452 = vector.load %arg3[%c0_687, %c56_688, %c24_689] : memref<1x64x48xf32, #tpu.memory_space<vmem>>, vector<1x8x4xf32>
    %453 = vector.shape_cast %452 : vector<1x8x4xf32> to vector<8x4xf32>
    %454 = vector.shape_cast %451 : vector<8x4xf32> to vector<1x8x4xf32>
    tpu.vector_store %arg3[%c0_687, %c56_688, %c24_689], %454 {strides = array<i32>} : memref<1x64x48xf32, #tpu.memory_space<vmem>>, vector<1x8x4xf32>,
    %c0_690 = arith.constant 0 : index
    %c1_691 = arith.constant 1 : index
    %c31_692 = arith.constant 31 : index
    %c0_693 = arith.constant 0 : index
    %c0_694 = arith.constant 0 : index
    %455 = vector.load %arg2[%c0_690, %c1_691, %c31_692, %c0_693, %c0_694] : memref<1x3x32x8x4xf32, #tpu.memory_space<vmem>>, vector<1x1x1x8x4xf32>
    %456 = vector.shape_cast %455 : vector<1x1x1x8x4xf32> to vector<8x4xf32>
    %c0_695 = arith.constant 0 : index
    %c56_696 = arith.constant 56 : index
    %c28_697 = arith.constant 28 : index
    %457 = vector.load %arg3[%c0_695, %c56_696, %c28_697] : memref<1x64x48xf32, #tpu.memory_space<vmem>>, vector<1x8x4xf32>
    %458 = vector.shape_cast %457 : vector<1x8x4xf32> to vector<8x4xf32>
    %459 = vector.shape_cast %456 : vector<8x4xf32> to vector<1x8x4xf32>
    tpu.vector_store %arg3[%c0_695, %c56_696, %c28_697], %459 {strides = array<i32>} : memref<1x64x48xf32, #tpu.memory_space<vmem>>, vector<1x8x4xf32>,
    %c0_698 = arith.constant 0 : index
    %c2_699 = arith.constant 2 : index
    %c28_700 = arith.constant 28 : index
    %c0_701 = arith.constant 0 : index
    %c0_702 = arith.constant 0 : index
    %460 = vector.load %arg2[%c0_698, %c2_699, %c28_700, %c0_701, %c0_702] : memref<1x3x32x8x4xf32, #tpu.memory_space<vmem>>, vector<1x1x1x8x4xf32>
    %461 = vector.shape_cast %460 : vector<1x1x1x8x4xf32> to vector<8x4xf32>
    %c0_703 = arith.constant 0 : index
    %c56_704 = arith.constant 56 : index
    %c32_705 = arith.constant 32 : index
    %462 = vector.load %arg3[%c0_703, %c56_704, %c32_705] : memref<1x64x48xf32, #tpu.memory_space<vmem>>, vector<1x8x4xf32>
    %463 = vector.shape_cast %462 : vector<1x8x4xf32> to vector<8x4xf32>
    %464 = vector.shape_cast %461 : vector<8x4xf32> to vector<1x8x4xf32>
    tpu.vector_store %arg3[%c0_703, %c56_704, %c32_705], %464 {strides = array<i32>} : memref<1x64x48xf32, #tpu.memory_space<vmem>>, vector<1x8x4xf32>,
    %c0_706 = arith.constant 0 : index
    %c2_707 = arith.constant 2 : index
    %c29_708 = arith.constant 29 : index
    %c0_709 = arith.constant 0 : index
    %c0_710 = arith.constant 0 : index
    %465 = vector.load %arg2[%c0_706, %c2_707, %c29_708, %c0_709, %c0_710] : memref<1x3x32x8x4xf32, #tpu.memory_space<vmem>>, vector<1x1x1x8x4xf32>
    %466 = vector.shape_cast %465 : vector<1x1x1x8x4xf32> to vector<8x4xf32>
    %c0_711 = arith.constant 0 : index
    %c56_712 = arith.constant 56 : index
    %c36_713 = arith.constant 36 : index
    %467 = vector.load %arg3[%c0_711, %c56_712, %c36_713] : memref<1x64x48xf32, #tpu.memory_space<vmem>>, vector<1x8x4xf32>
    %468 = vector.shape_cast %467 : vector<1x8x4xf32> to vector<8x4xf32>
    %469 = vector.shape_cast %466 : vector<8x4xf32> to vector<1x8x4xf32>
    tpu.vector_store %arg3[%c0_711, %c56_712, %c36_713], %469 {strides = array<i32>} : memref<1x64x48xf32, #tpu.memory_space<vmem>>, vector<1x8x4xf32>,
    %c0_714 = arith.constant 0 : index
    %c2_715 = arith.constant 2 : index
    %c30_716 = arith.constant 30 : index
    %c0_717 = arith.constant 0 : index
    %c0_718 = arith.constant 0 : index
    %470 = vector.load %arg2[%c0_714, %c2_715, %c30_716, %c0_717, %c0_718] : memref<1x3x32x8x4xf32, #tpu.memory_space<vmem>>, vector<1x1x1x8x4xf32>
    %471 = vector.shape_cast %470 : vector<1x1x1x8x4xf32> to vector<8x4xf32>
    %c0_719 = arith.constant 0 : index
    %c56_720 = arith.constant 56 : index
    %c40_721 = arith.constant 40 : index
    %472 = vector.load %arg3[%c0_719, %c56_720, %c40_721] : memref<1x64x48xf32, #tpu.memory_space<vmem>>, vector<1x8x4xf32>
    %473 = vector.shape_cast %472 : vector<1x8x4xf32> to vector<8x4xf32>
    %474 = vector.shape_cast %471 : vector<8x4xf32> to vector<1x8x4xf32>
    tpu.vector_store %arg3[%c0_719, %c56_720, %c40_721], %474 {strides = array<i32>} : memref<1x64x48xf32, #tpu.memory_space<vmem>>, vector<1x8x4xf32>,
    %c0_722 = arith.constant 0 : index
    %c2_723 = arith.constant 2 : index
    %c31_724 = arith.constant 31 : index
    %c0_725 = arith.constant 0 : index
    %c0_726 = arith.constant 0 : index
    %475 = vector.load %arg2[%c0_722, %c2_723, %c31_724, %c0_725, %c0_726] : memref<1x3x32x8x4xf32, #tpu.memory_space<vmem>>, vector<1x1x1x8x4xf32>
    %476 = vector.shape_cast %475 : vector<1x1x1x8x4xf32> to vector<8x4xf32>
    %c0_727 = arith.constant 0 : index
    %c56_728 = arith.constant 56 : index
    %c44_729 = arith.constant 44 : index
    %477 = vector.load %arg3[%c0_727, %c56_728, %c44_729] : memref<1x64x48xf32, #tpu.memory_space<vmem>>, vector<1x8x4xf32>
    %478 = vector.shape_cast %477 : vector<1x8x4xf32> to vector<8x4xf32>
    %479 = vector.shape_cast %476 : vector<8x4xf32> to vector<1x8x4xf32>
    tpu.vector_store %arg3[%c0_727, %c56_728, %c44_729], %479 {strides = array<i32>} : memref<1x64x48xf32, #tpu.memory_space<vmem>>, vector<1x8x4xf32>,
    return
  }
  func.func @transform_0(%arg0: i32, %arg1: i32) -> (i32, i32, i32, i32, i32) {
    %c0_i32 = arith.constant 0 : i32
    %c0_i32_0 = arith.constant 0 : i32
    %c0_i32_1 = arith.constant 0 : i32
    %c0_i32_2 = arith.constant 0 : i32
    return %arg0, %c0_i32, %arg1, %c0_i32_0, %c0_i32_1 : i32, i32, i32, i32, i32
  }
  func.func @transform_1(%arg0: i32, %arg1: i32) -> (i32, i32, i32) {
    %c0_i32 = arith.constant 0 : i32
    %c0_i32_0 = arith.constant 0 : i32
    return %arg0, %arg1, %c0_i32 : i32, i32, i32
  }
}

</mosaic_0001>

<llo_original>
// kernel: tpu_custom_call.1
$region0: #{tpu_custom_call.1}
  #allocation0 [shape = 'u32[]', space=smem, size = 0x4, offset = 0x4, fixed_abs, tag = 'smem constant byte address 0x4 - core index']
  #allocation1 [shape = 'u32[144,128]{1,0:T(1,128)}', space=vmem, size = 0x12000, scoped, tag = 'internal scratch']
  %s0 = inlined_call_operand.vmem [shape: f32[2,3,32,8,4], index: 0, kind: input, shape index: {}]
  %s1 = inlined_call_operand.vmem [shape: f32[2,64,48], index: 1, kind: output, shape index: {}]
  %s2 = sld [smem:[#allocation0]]
  $region37: #{tpu_custom_call.1} parent=0
    _
  %s4 = ssub.s32 1, %s2
  %s5 = scalar_select 0, %s4, %s2
  loop: start=0, step=1, limit=4
  $region2: #{tpu_custom_call.1} parent=0 // loop_pre_header
    _
  $region3: #{tpu_custom_call.1} parent=0 // loop_header
    %s7 = sphi 0, %s11
    %p8 = scmp.ge.s32.totalorder %s7, 4
    %s14 = sphi 0, %s26
    %s15 = sphi 0, %s22
    %s16 = sphi 0, %s14
    %s17 = sphi 0, %s15
    %s18 = sphi 0, %s16
    %s19 = sphi 0, %s17
    %s31 = sphi 0, %s33
    %s34 = sphi 0, %s31
    %s35 = sphi 0, %s34
    %s51 = sphi 0, %s35
    %s59 = sphi 0, %s61
    %s62 = sphi 0, %s59
    %s63 = sphi 0, %s62
    %s79 = sphi 0, %s63
  $region4: #{tpu_custom_call.1} parent=0 // loop_header_branch
    %10 = sbr.rel (%p8) target = $region8
  $region5: #{tpu_custom_call.1} parent=0 // loop_body
    %s12 = ssub.s32 %s7, 1
    %s13 = ssub.s32 %s7, 2
    %s20 = sadd.s32 1, %s15
    %p21 = scmp.ge.s32.totalorder %s20, 1
    %s22 = scalar_select %p21, 0, %s20
    %s23 = sadd.s32 1, %s14
    %s24 = scalar_select %p21, %s23, %s14
    %p25 = scmp.ge.s32.totalorder %s24, 2
    %s26 = scalar_select %p25, 0, %s24
    %s27 = ssub.s32 %s14, %s26
    %s28 = ssub.s32 %s15, %s22
    %s29 = sor.u32 %s27, %s28
    %p30 = scmp.eq.s32.totalorder %s29, 0
    %s32 = sadd.s32 %s31, 1
    %s33 = scalar_select %p30, %s31, %s32
    %p36 = pneg %p30
    %p37 = scmp.eq.s32.totalorder %s7, 1
    %p38 = por %p36, %p37
    %p39 = scmp.ne.s32.totalorder %s31, %s34
    %p40 = scmp.eq.s32.totalorder %s7, 0
    %p41 = por %p39, %p40
    %p42 = scmp.ne.s32.totalorder %s31, %s34
    %p43 = scmp.eq.s32.totalorder %s12, 1
    %p44 = por %p42, %p43
    %p45 = scmp.ne.s32.totalorder %s34, %s35
    %p46 = scmp.eq.s32.totalorder %s12, 0
    %p47 = por %p45, %p46
    %p48 = scmp.ne.s32.totalorder %s34, %s35
    %p49 = scmp.eq.s32.totalorder %s13, 1
    %p50 = por %p48, %p49
    %p52 = scmp.ne.s32.totalorder %s35, %s51
    %p53 = scmp.eq.s32.totalorder %s13, 0
    %p54 = por %p52, %p53
    %s55 = ssub.s32 %s14, %s26
    %s56 = ssub.s32 %s15, %s22
    %s57 = sor.u32 %s55, %s56
    %p58 = scmp.eq.s32.totalorder %s57, 0
    %s60 = sadd.s32 %s59, 1
    %s61 = scalar_select %p58, %s59, %s60
    %p64 = pneg %p58
    %p65 = scmp.eq.s32.totalorder %s7, 1
    %p66 = por %p64, %p65
    %p67 = scmp.ne.s32.totalorder %s59, %s62
    %p68 = scmp.eq.s32.totalorder %s7, 0
    %p69 = por %p67, %p68
    %p70 = scmp.ne.s32.totalorder %s59, %s62
    %p71 = scmp.eq.s32.totalorder %s12, 1
    %p72 = por %p70, %p71
    %p73 = scmp.ne.s32.totalorder %s62, %s63
    %p74 = scmp.eq.s32.totalorder %s12, 0
    %p75 = por %p73, %p74
    %p76 = scmp.ne.s32.totalorder %s62, %s63
    %p77 = scmp.eq.s32.totalorder %s13, 1
    %p78 = por %p76, %p77
    %p80 = scmp.ne.s32.totalorder %s63, %s79
    %p81 = scmp.eq.s32.totalorder %s13, 0
    %p82 = por %p80, %p81
    %p83 = scmp.le.s32.totalorder 1, %s7
    %p84 = scmp.lt.s32.totalorder %s7, 3
    %p85 = pnand %p83, %p84
    %p86 = pneg %p85
    // Predicated region
    $region9: #{tpu_custom_call.1} parent=5 // pred_check
      _
    $region10: #{tpu_custom_call.1} parent=5 // pred_check_branch
      %88 = sbr.rel (%p85) target = $region12
    $region11: #{tpu_custom_call.1} parent=5 // pred_region
      %s89 = ssub.s32 %s7, 1
    $region12: #{tpu_custom_call.1} parent=5 // pred_fallthru
      _
    %p90 = scmp.lt.s32.totalorder %s7, 2
    // Predicated region
    $region13: #{tpu_custom_call.1} parent=5 // pred_check
      %p91 = pneg %p90
    $region14: #{tpu_custom_call.1} parent=5 // pred_check_branch
      %93 = sbr.rel (%p91) target = $region16
    $region15: #{tpu_custom_call.1} parent=5 // pred_region
      // Predicated region
      $region17: #{tpu_custom_call.1} parent=15 // pred_check
        %p94 = pneg %p41
      $region18: #{tpu_custom_call.1} parent=15 // pred_check_branch
        %96 = sbr.rel (%p94) target = $region20
      $region19: #{tpu_custom_call.1} parent=15 // pred_region
        %s97 = smul.u32 32, %s15
        %p98 = scmp.lt.s32.totalorder %s14, 1
        %s99 = scalar_select %p98, %s14, 1
        %p100 = scmp.lt.s32.totalorder %s97, 31
        %s101 = scalar_select %p100, %s97, 31
        %s102 = smul.addr %s99, 96
        %s103 = sadd.s32 %s101, %s102
        %s104 = smul.addr %s103, 8
        %s105 = scalar_lea.vmem %s0, %s104
        %s106 = smul.u32 32, %s15
      $region20: #{tpu_custom_call.1} parent=15 // pred_fallthru
        _
    $region16: #{tpu_custom_call.1} parent=5 // pred_fallthru
      _
    %p107 = scmp.le.s32.totalorder 1, %s7
    %p108 = scmp.lt.s32.totalorder %s7, 3
    %p109 = pnand %p107, %p108
    %p110 = pneg %p109
    // Predicated region
    $region21: #{tpu_custom_call.1} parent=5 // pred_check
      _
    $region22: #{tpu_custom_call.1} parent=5 // pred_check_branch
      %112 = sbr.rel (%p109) target = $region24
    $region23: #{tpu_custom_call.1} parent=5 // pred_region
      %s113 = ssub.s32 %s7, 1
      %s114 = smul.u32 32, %s17
      %p115 = scmp.lt.s32.totalorder %s16, 1
      %s116 = scalar_select %p115, %s16, 1
      %p117 = scmp.lt.s32.totalorder %s114, 31
      %s118 = scalar_select %p117, %s114, 31
      %s119 = smul.addr %s116, 96
      %s120 = sadd.s32 %s118, %s119
      %s121 = smul.addr %s120, 8
      %s122 = scalar_lea.vmem %s0, %s121
      %p123 = pneg %p47
      %p124 = pneg %p44
      %p125 = pneg %p75
      %p126 = pneg %p72
      %s127 = smul.u32 8, %s17
      %p128 = scmp.lt.s32.totalorder %s16, 1
      %s129 = scalar_select %p128, %s16, 1
      %p130 = scmp.lt.s32.totalorder %s127, 7
      %s131 = scalar_select %p130, %s127, 7
      %s132 = smul.addr %s129, 8
      %s133 = sadd.s32 %s131, %s132
      %s134 = smul.addr %s133, 8
      %s135 = scalar_lea.vmem %s1, %s134
      %s136 = smul.u32 32, %s17
      %p137 = scmp.lt.s32.totalorder %s16, 1
      %s138 = scalar_select %p137, %s16, 1
      %p139 = scmp.lt.s32.totalorder %s136, 31
      %s140 = scalar_select %p139, %s136, 31
      %s141 = smul.addr %s138, 96
      %s142 = sadd.s32 %s140, %s141
      %s143 = smul.addr %s142, 8
      %s144 = scalar_lea.vmem %s0, %s143
      %s145 = smul.u32 32, %s17
      %s146 = smul.u32 8, %s17
      %p147 = scmp.lt.s32.totalorder %s16, 1
      %s148 = scalar_select %p147, %s16, 1
      %p149 = scmp.lt.s32.totalorder %s146, 7
      %s150 = scalar_select %p149, %s146, 7
      %s151 = smul.addr %s148, 8
      %s152 = sadd.s32 %s150, %s151
      %s153 = smul.addr %s152, 8
      %s154 = scalar_lea.vmem %s1, %s153
      %s155 = smul.u32 8, %s17
      %v156 = vld [vmem:[%s144] sm:$0xff]
      %vm157 = vcmask 31744
      %158 = vst.msk [vmem:[%s154] sm:$0xff] %vm157, %v156
      %s159 = scalar_lea.vmem %s144, 8
      %v160 = vld [vmem:[%s159] sm:$0xff]
      %162 = vrot.lane.b32.xlu0 %v160, 4
      %v163 = vpop.permute.xlu0 %162
      %vm165 = vcmask 64544
      %166 = vst.msk [vmem:[%s154] sm:$0xff] %vm165, %v163
      %s167 = scalar_lea.vmem %s144, 16
      %v168 = vld [vmem:[%s167] sm:$0xff]
      %170 = vrot.lane.b32.xlu0 %v168, 8
      %v171 = vpop.permute.xlu0 %170
      %vm173 = vcmask 97344
      %174 = vst.msk [vmem:[%s154] sm:$0xff] %vm173, %v171
      %s175 = scalar_lea.vmem %s144, 24
      %v176 = vld [vmem:[%s175] sm:$0xff]
      %178 = vrot.lane.b32.xlu0 %v176, 12
      %v179 = vpop.permute.xlu0 %178
      %vm181 = vcmask 130144
      %182 = vst.msk [vmem:[%s154] sm:$0xff] %vm181, %v179
      %s183 = scalar_lea.vmem %s144, 256
      %v184 = vld [vmem:[%s183] sm:$0xff]
      %186 = vrot.lane.b32.xlu0 %v184, 16
      %v187 = vpop.permute.xlu0 %186
      %vm189 = vcmask 162944
      %190 = vst.msk [vmem:[%s154] sm:$0xff] %vm189, %v187
      %s191 = scalar_lea.vmem %s144, 264
      %v192 = vld [vmem:[%s191] sm:$0xff]
      %194 = vrot.lane.b32.xlu0 %v192, 20
      %v195 = vpop.permute.xlu0 %194
      %vm197 = vcmask 195744
      %198 = vst.msk [vmem:[%s154] sm:$0xff] %vm197, %v195
      %s199 = scalar_lea.vmem %s144, 272
      %v200 = vld [vmem:[%s199] sm:$0xff]
      %202 = vrot.lane.b32.xlu0 %v200, 24
      %v203 = vpop.permute.xlu0 %202
      %vm205 = vcmask 228544
      %206 = vst.msk [vmem:[%s154] sm:$0xff] %vm205, %v203
      %s207 = scalar_lea.vmem %s144, 280
      %v208 = vld [vmem:[%s207] sm:$0xff]
      %210 = vrot.lane.b32.xlu0 %v208, 28
      %v211 = vpop.permute.xlu0 %210
      %vm213 = vcmask 261344
      %214 = vst.msk [vmem:[%s154] sm:$0xff] %vm213, %v211
      %s215 = scalar_lea.vmem %s144, 512
      %v216 = vld [vmem:[%s215] sm:$0xff]
      %218 = vrot.lane.b32.xlu0 %v216, 32
      %v219 = vpop.permute.xlu0 %218
      %vm221 = vcmask 294144
      %222 = vst.msk [vmem:[%s154] sm:$0xff] %vm221, %v219
      %s223 = scalar_lea.vmem %s144, 520
      %v224 = vld [vmem:[%s223] sm:$0xff]
      %226 = vrot.lane.b32.xlu0 %v224, 36
      %v227 = vpop.permute.xlu0 %226
      %vm229 = vcmask 326944
      %230 = vst.msk [vmem:[%s154] sm:$0xff] %vm229, %v227
      %s231 = scalar_lea.vmem %s144, 528
      %v232 = vld [vmem:[%s231] sm:$0xff]
      %234 = vrot.lane.b32.xlu0 %v232, 40
      %v235 = vpop.permute.xlu0 %234
      %vm237 = vcmask 359744
      %238 = vst.msk [vmem:[%s154] sm:$0xff] %vm237, %v235
      %s239 = scalar_lea.vmem %s144, 536
      %v240 = vld [vmem:[%s239] sm:$0xff]
      %242 = vrot.lane.b32.xlu0 %v240, 44
      %v243 = vpop.permute.xlu0 %242
      %vm245 = vcmask 392544
      %246 = vst.msk [vmem:[%s154] sm:$0xff] %vm245, %v243
      %s247 = scalar_lea.vmem %s144, 32
      %v248 = vld [vmem:[%s247] sm:$0xff]
      %249 = vst.msk [vmem:[%s154 + $0x8] sm:$0xff] %vm157, %v248
      %s250 = scalar_lea.vmem %s144, 40
      %v251 = vld [vmem:[%s250] sm:$0xff]
      %253 = vrot.lane.b32.xlu0 %v251, 4
      %v254 = vpop.permute.xlu0 %253
      %256 = vst.msk [vmem:[%s154 + $0x8] sm:$0xff] %vm165, %v254
      %s257 = scalar_lea.vmem %s144, 48
      %v258 = vld [vmem:[%s257] sm:$0xff]
      %260 = vrot.lane.b32.xlu0 %v258, 8
      %v261 = vpop.permute.xlu0 %260
      %263 = vst.msk [vmem:[%s154 + $0x8] sm:$0xff] %vm173, %v261
      %s264 = scalar_lea.vmem %s144, 56
      %v265 = vld [vmem:[%s264] sm:$0xff]
      %267 = vrot.lane.b32.xlu0 %v265, 12
      %v268 = vpop.permute.xlu0 %267
      %270 = vst.msk [vmem:[%s154 + $0x8] sm:$0xff] %vm181, %v268
      %s271 = scalar_lea.vmem %s144, 288
      %v272 = vld [vmem:[%s271] sm:$0xff]
      %274 = vrot.lane.b32.xlu0 %v272, 16
      %v275 = vpop.permute.xlu0 %274
      %277 = vst.msk [vmem:[%s154 + $0x8] sm:$0xff] %vm189, %v275
      %s278 = scalar_lea.vmem %s144, 296
      %v279 = vld [vmem:[%s278] sm:$0xff]
      %281 = vrot.lane.b32.xlu0 %v279, 20
      %v282 = vpop.permute.xlu0 %281
      %284 = vst.msk [vmem:[%s154 + $0x8] sm:$0xff] %vm197, %v282
      %s285 = scalar_lea.vmem %s144, 304
      %v286 = vld [vmem:[%s285] sm:$0xff]
      %288 = vrot.lane.b32.xlu0 %v286, 24
      %v289 = vpop.permute.xlu0 %288
      %291 = vst.msk [vmem:[%s154 + $0x8] sm:$0xff] %vm205, %v289
      %s292 = scalar_lea.vmem %s144, 312
      %v293 = vld [vmem:[%s292] sm:$0xff]
      %295 = vrot.lane.b32.xlu0 %v293, 28
      %v296 = vpop.permute.xlu0 %295
      %298 = vst.msk [vmem:[%s154 + $0x8] sm:$0xff] %vm213, %v296
      %s299 = scalar_lea.vmem %s144, 544
      %v300 = vld [vmem:[%s299] sm:$0xff]
      %302 = vrot.lane.b32.xlu0 %v300, 32
      %v303 = vpop.permute.xlu0 %302
      %305 = vst.msk [vmem:[%s154 + $0x8] sm:$0xff] %vm221, %v303
      %s306 = scalar_lea.vmem %s144, 552
      %v307 = vld [vmem:[%s306] sm:$0xff]
      %309 = vrot.lane.b32.xlu0 %v307, 36
      %v310 = vpop.permute.xlu0 %309
      %312 = vst.msk [vmem:[%s154 + $0x8] sm:$0xff] %vm229, %v310
      %s313 = scalar_lea.vmem %s144, 560
      %v314 = vld [vmem:[%s313] sm:$0xff]
      %316 = vrot.lane.b32.xlu0 %v314, 40
      %v317 = vpop.permute.xlu0 %316
      %319 = vst.msk [vmem:[%s154 + $0x8] sm:$0xff] %vm237, %v317
      %s320 = scalar_lea.vmem %s144, 568
      %v321 = vld [vmem:[%s320] sm:$0xff]
      %323 = vrot.lane.b32.xlu0 %v321, 44
      %v324 = vpop.permute.xlu0 %323
      %326 = vst.msk [vmem:[%s154 + $0x8] sm:$0xff] %vm245, %v324
      %s327 = scalar_lea.vmem %s144, 64
      %v328 = vld [vmem:[%s327] sm:$0xff]
      %329 = vst.msk [vmem:[%s154 + $0x10] sm:$0xff] %vm157, %v328
      %s330 = scalar_lea.vmem %s144, 72
      %v331 = vld [vmem:[%s330] sm:$0xff]
      %333 = vrot.lane.b32.xlu0 %v331, 4
      %v334 = vpop.permute.xlu0 %333
      %336 = vst.msk [vmem:[%s154 + $0x10] sm:$0xff] %vm165, %v334
      %s337 = scalar_lea.vmem %s144, 80
      %v338 = vld [vmem:[%s337] sm:$0xff]
      %340 = vrot.lane.b32.xlu0 %v338, 8
      %v341 = vpop.permute.xlu0 %340
      %343 = vst.msk [vmem:[%s154 + $0x10] sm:$0xff] %vm173, %v341
      %s344 = scalar_lea.vmem %s144, 88
      %v345 = vld [vmem:[%s344] sm:$0xff]
      %347 = vrot.lane.b32.xlu0 %v345, 12
      %v348 = vpop.permute.xlu0 %347
      %350 = vst.msk [vmem:[%s154 + $0x10] sm:$0xff] %vm181, %v348
      %s351 = scalar_lea.vmem %s144, 320
      %v352 = vld [vmem:[%s351] sm:$0xff]
      %354 = vrot.lane.b32.xlu0 %v352, 16
      %v355 = vpop.permute.xlu0 %354
      %357 = vst.msk [vmem:[%s154 + $0x10] sm:$0xff] %vm189, %v355
      %s358 = scalar_lea.vmem %s144, 328
      %v359 = vld [vmem:[%s358] sm:$0xff]
      %361 = vrot.lane.b32.xlu0 %v359, 20
      %v362 = vpop.permute.xlu0 %361
      %364 = vst.msk [vmem:[%s154 + $0x10] sm:$0xff] %vm197, %v362
      %s365 = scalar_lea.vmem %s144, 336
      %v366 = vld [vmem:[%s365] sm:$0xff]
      %368 = vrot.lane.b32.xlu0 %v366, 24
      %v369 = vpop.permute.xlu0 %368
      %371 = vst.msk [vmem:[%s154 + $0x10] sm:$0xff] %vm205, %v369
      %s372 = scalar_lea.vmem %s144, 344
      %v373 = vld [vmem:[%s372] sm:$0xff]
      %375 = vrot.lane.b32.xlu0 %v373, 28
      %v376 = vpop.permute.xlu0 %375
      %378 = vst.msk [vmem:[%s154 + $0x10] sm:$0xff] %vm213, %v376
      %s379 = scalar_lea.vmem %s144, 576
      %v380 = vld [vmem:[%s379] sm:$0xff]
      %382 = vrot.lane.b32.xlu0 %v380, 32
      %v383 = vpop.permute.xlu0 %382
      %385 = vst.msk [vmem:[%s154 + $0x10] sm:$0xff] %vm221, %v383
      %s386 = scalar_lea.vmem %s144, 584
      %v387 = vld [vmem:[%s386] sm:$0xff]
      %389 = vrot.lane.b32.xlu0 %v387, 36
      %v390 = vpop.permute.xlu0 %389
      %392 = vst.msk [vmem:[%s154 + $0x10] sm:$0xff] %vm229, %v390
      %s393 = scalar_lea.vmem %s144, 592
      %v394 = vld [vmem:[%s393] sm:$0xff]
      %396 = vrot.lane.b32.xlu0 %v394, 40
      %v397 = vpop.permute.xlu0 %396
      %399 = vst.msk [vmem:[%s154 + $0x10] sm:$0xff] %vm237, %v397
      %s400 = scalar_lea.vmem %s144, 600
      %v401 = vld [vmem:[%s400] sm:$0xff]
      %403 = vrot.lane.b32.xlu0 %v401, 44
      %v404 = vpop.permute.xlu0 %403
      %406 = vst.msk [vmem:[%s154 + $0x10] sm:$0xff] %vm245, %v404
      %s407 = scalar_lea.vmem %s144, 96
      %v408 = vld [vmem:[%s407] sm:$0xff]
      %409 = vst.msk [vmem:[%s154 + $0x18] sm:$0xff] %vm157, %v408
      %s410 = scalar_lea.vmem %s144, 104
      %v411 = vld [vmem:[%s410] sm:$0xff]
      %413 = vrot.lane.b32.xlu0 %v411, 4
      %v414 = vpop.permute.xlu0 %413
      %416 = vst.msk [vmem:[%s154 + $0x18] sm:$0xff] %vm165, %v414
      %s417 = scalar_lea.vmem %s144, 112
      %v418 = vld [vmem:[%s417] sm:$0xff]
      %420 = vrot.lane.b32.xlu0 %v418, 8
      %v421 = vpop.permute.xlu0 %420
      %423 = vst.msk [vmem:[%s154 + $0x18] sm:$0xff] %vm173, %v421
      %s424 = scalar_lea.vmem %s144, 120
      %v425 = vld [vmem:[%s424] sm:$0xff]
      %427 = vrot.lane.b32.xlu0 %v425, 12
      %v428 = vpop.permute.xlu0 %427
      %430 = vst.msk [vmem:[%s154 + $0x18] sm:$0xff] %vm181, %v428
      %s431 = scalar_lea.vmem %s144, 352
      %v432 = vld [vmem:[%s431] sm:$0xff]
      %434 = vrot.lane.b32.xlu0 %v432, 16
      %v435 = vpop.permute.xlu0 %434
      %437 = vst.msk [vmem:[%s154 + $0x18] sm:$0xff] %vm189, %v435
      %s438 = scalar_lea.vmem %s144, 360
      %v439 = vld [vmem:[%s438] sm:$0xff]
      %441 = vrot.lane.b32.xlu0 %v439, 20
      %v442 = vpop.permute.xlu0 %441
      %444 = vst.msk [vmem:[%s154 + $0x18] sm:$0xff] %vm197, %v442
      %s445 = scalar_lea.vmem %s144, 368
      %v446 = vld [vmem:[%s445] sm:$0xff]
      %448 = vrot.lane.b32.xlu0 %v446, 24
      %v449 = vpop.permute.xlu0 %448
      %451 = vst.msk [vmem:[%s154 + $0x18] sm:$0xff] %vm205, %v449
      %s452 = scalar_lea.vmem %s144, 376
      %v453 = vld [vmem:[%s452] sm:$0xff]
      %455 = vrot.lane.b32.xlu0 %v453, 28
      %v456 = vpop.permute.xlu0 %455
      %458 = vst.msk [vmem:[%s154 + $0x18] sm:$0xff] %vm213, %v456
      %s459 = scalar_lea.vmem %s144, 608
      %v460 = vld [vmem:[%s459] sm:$0xff]
      %462 = vrot.lane.b32.xlu0 %v460, 32
      %v463 = vpop.permute.xlu0 %462
      %465 = vst.msk [vmem:[%s154 + $0x18] sm:$0xff] %vm221, %v463
      %s466 = scalar_lea.vmem %s144, 616
      %v467 = vld [vmem:[%s466] sm:$0xff]
      %469 = vrot.lane.b32.xlu0 %v467, 36
      %v470 = vpop.permute.xlu0 %469
      %472 = vst.msk [vmem:[%s154 + $0x18] sm:$0xff] %vm229, %v470
      %s473 = scalar_lea.vmem %s144, 624
      %v474 = vld [vmem:[%s473] sm:$0xff]
      %476 = vrot.lane.b32.xlu0 %v474, 40
      %v477 = vpop.permute.xlu0 %476
      %479 = vst.msk [vmem:[%s154 + $0x18] sm:$0xff] %vm237, %v477
      %s480 = scalar_lea.vmem %s144, 632
      %v481 = vld [vmem:[%s480] sm:$0xff]
      %483 = vrot.lane.b32.xlu0 %v481, 44
      %v484 = vpop.permute.xlu0 %483
      %486 = vst.msk [vmem:[%s154 + $0x18] sm:$0xff] %vm245, %v484
      %s487 = scalar_lea.vmem %s144, 128
      %v488 = vld [vmem:[%s487] sm:$0xff]
      %489 = vst.msk [vmem:[%s154 + $0x20] sm:$0xff] %vm157, %v488
      %s490 = scalar_lea.vmem %s144, 136
      %v491 = vld [vmem:[%s490] sm:$0xff]
      %493 = vrot.lane.b32.xlu0 %v491, 4
      %v494 = vpop.permute.xlu0 %493
      %496 = vst.msk [vmem:[%s154 + $0x20] sm:$0xff] %vm165, %v494
      %s497 = scalar_lea.vmem %s144, 144
      %v498 = vld [vmem:[%s497] sm:$0xff]
      %500 = vrot.lane.b32.xlu0 %v498, 8
      %v501 = vpop.permute.xlu0 %500
      %503 = vst.msk [vmem:[%s154 + $0x20] sm:$0xff] %vm173, %v501
      %s504 = scalar_lea.vmem %s144, 152
      %v505 = vld [vmem:[%s504] sm:$0xff]
      %507 = vrot.lane.b32.xlu0 %v505, 12
      %v508 = vpop.permute.xlu0 %507
      %510 = vst.msk [vmem:[%s154 + $0x20] sm:$0xff] %vm181, %v508
      %s511 = scalar_lea.vmem %s144, 384
      %v512 = vld [vmem:[%s511] sm:$0xff]
      %514 = vrot.lane.b32.xlu0 %v512, 16
      %v515 = vpop.permute.xlu0 %514
      %517 = vst.msk [vmem:[%s154 + $0x20] sm:$0xff] %vm189, %v515
      %s518 = scalar_lea.vmem %s144, 392
      %v519 = vld [vmem:[%s518] sm:$0xff]
      %521 = vrot.lane.b32.xlu0 %v519, 20
      %v522 = vpop.permute.xlu0 %521
      %524 = vst.msk [vmem:[%s154 + $0x20] sm:$0xff] %vm197, %v522
      %s525 = scalar_lea.vmem %s144, 400
      %v526 = vld [vmem:[%s525] sm:$0xff]
      %528 = vrot.lane.b32.xlu0 %v526, 24
      %v529 = vpop.permute.xlu0 %528
      %531 = vst.msk [vmem:[%s154 + $0x20] sm:$0xff] %vm205, %v529
      %s532 = scalar_lea.vmem %s144, 408
      %v533 = vld [vmem:[%s532] sm:$0xff]
      %535 = vrot.lane.b32.xlu0 %v533, 28
      %v536 = vpop.permute.xlu0 %535
      %538 = vst.msk [vmem:[%s154 + $0x20] sm:$0xff] %vm213, %v536
      %s539 = scalar_lea.vmem %s144, 640
      %v540 = vld [vmem:[%s539] sm:$0xff]
      %542 = vrot.lane.b32.xlu0 %v540, 32
      %v543 = vpop.permute.xlu0 %542
      %545 = vst.msk [vmem:[%s154 + $0x20] sm:$0xff] %vm221, %v543
      %s546 = scalar_lea.vmem %s144, 648
      %v547 = vld [vmem:[%s546] sm:$0xff]
      %549 = vrot.lane.b32.xlu0 %v547, 36
      %v550 = vpop.permute.xlu0 %549
      %552 = vst.msk [vmem:[%s154 + $0x20] sm:$0xff] %vm229, %v550
      %s553 = scalar_lea.vmem %s144, 656
      %v554 = vld [vmem:[%s553] sm:$0xff]
      %556 = vrot.lane.b32.xlu0 %v554, 40
      %v557 = vpop.permute.xlu0 %556
      %559 = vst.msk [vmem:[%s154 + $0x20] sm:$0xff] %vm237, %v557
      %s560 = scalar_lea.vmem %s144, 664
      %v561 = vld [vmem:[%s560] sm:$0xff]
      %563 = vrot.lane.b32.xlu0 %v561, 44
      %v564 = vpop.permute.xlu0 %563
      %566 = vst.msk [vmem:[%s154 + $0x20] sm:$0xff] %vm245, %v564
      %s567 = scalar_lea.vmem %s144, 160
      %v568 = vld [vmem:[%s567] sm:$0xff]
      %569 = vst.msk [vmem:[%s154 + $0x28] sm:$0xff] %vm157, %v568
      %s570 = scalar_lea.vmem %s144, 168
      %v571 = vld [vmem:[%s570] sm:$0xff]
      %573 = vrot.lane.b32.xlu0 %v571, 4
      %v574 = vpop.permute.xlu0 %573
      %576 = vst.msk [vmem:[%s154 + $0x28] sm:$0xff] %vm165, %v574
      %s577 = scalar_lea.vmem %s144, 176
      %v578 = vld [vmem:[%s577] sm:$0xff]
      %580 = vrot.lane.b32.xlu0 %v578, 8
      %v581 = vpop.permute.xlu0 %580
      %583 = vst.msk [vmem:[%s154 + $0x28] sm:$0xff] %vm173, %v581
      %s584 = scalar_lea.vmem %s144, 184
      %v585 = vld [vmem:[%s584] sm:$0xff]
      %587 = vrot.lane.b32.xlu0 %v585, 12
      %v588 = vpop.permute.xlu0 %587
      %590 = vst.msk [vmem:[%s154 + $0x28] sm:$0xff] %vm181, %v588
      %s591 = scalar_lea.vmem %s144, 416
      %v592 = vld [vmem:[%s591] sm:$0xff]
      %594 = vrot.lane.b32.xlu0 %v592, 16
      %v595 = vpop.permute.xlu0 %594
      %597 = vst.msk [vmem:[%s154 + $0x28] sm:$0xff] %vm189, %v595
      %s598 = scalar_lea.vmem %s144, 424
      %v599 = vld [vmem:[%s598] sm:$0xff]
      %601 = vrot.lane.b32.xlu0 %v599, 20
      %v602 = vpop.permute.xlu0 %601
      %604 = vst.msk [vmem:[%s154 + $0x28] sm:$0xff] %vm197, %v602
      %s605 = scalar_lea.vmem %s144, 432
      %v606 = vld [vmem:[%s605] sm:$0xff]
      %608 = vrot.lane.b32.xlu0 %v606, 24
      %v609 = vpop.permute.xlu0 %608
      %611 = vst.msk [vmem:[%s154 + $0x28] sm:$0xff] %vm205, %v609
      %s612 = scalar_lea.vmem %s144, 440
      %v613 = vld [vmem:[%s612] sm:$0xff]
      %615 = vrot.lane.b32.xlu0 %v613, 28
      %v616 = vpop.permute.xlu0 %615
      %618 = vst.msk [vmem:[%s154 + $0x28] sm:$0xff] %vm213, %v616
      %s619 = scalar_lea.vmem %s144, 672
      %v620 = vld [vmem:[%s619] sm:$0xff]
      %622 = vrot.lane.b32.xlu0 %v620, 32
      %v623 = vpop.permute.xlu0 %622
      %625 = vst.msk [vmem:[%s154 + $0x28] sm:$0xff] %vm221, %v623
      %s626 = scalar_lea.vmem %s144, 680
      %v627 = vld [vmem:[%s626] sm:$0xff]
      %629 = vrot.lane.b32.xlu0 %v627, 36
      %v630 = vpop.permute.xlu0 %629
      %632 = vst.msk [vmem:[%s154 + $0x28] sm:$0xff] %vm229, %v630
      %s633 = scalar_lea.vmem %s144, 688
      %v634 = vld [vmem:[%s633] sm:$0xff]
      %636 = vrot.lane.b32.xlu0 %v634, 40
      %v637 = vpop.permute.xlu0 %636
      %639 = vst.msk [vmem:[%s154 + $0x28] sm:$0xff] %vm237, %v637
      %s640 = scalar_lea.vmem %s144, 696
      %v641 = vld [vmem:[%s640] sm:$0xff]
      %643 = vrot.lane.b32.xlu0 %v641, 44
      %v644 = vpop.permute.xlu0 %643
      %646 = vst.msk [vmem:[%s154 + $0x28] sm:$0xff] %vm245, %v644
      %s647 = scalar_lea.vmem %s144, 192
      %v648 = vld [vmem:[%s647] sm:$0xff]
      %649 = vst.msk [vmem:[%s154 + $0x30] sm:$0xff] %vm157, %v648
      %s650 = scalar_lea.vmem %s144, 200
      %v651 = vld [vmem:[%s650] sm:$0xff]
      %653 = vrot.lane.b32.xlu0 %v651, 4
      %v654 = vpop.permute.xlu0 %653
      %656 = vst.msk [vmem:[%s154 + $0x30] sm:$0xff] %vm165, %v654
      %s657 = scalar_lea.vmem %s144, 208
      %v658 = vld [vmem:[%s657] sm:$0xff]
      %660 = vrot.lane.b32.xlu0 %v658, 8
      %v661 = vpop.permute.xlu0 %660
      %663 = vst.msk [vmem:[%s154 + $0x30] sm:$0xff] %vm173, %v661
      %s664 = scalar_lea.vmem %s144, 216
      %v665 = vld [vmem:[%s664] sm:$0xff]
      %667 = vrot.lane.b32.xlu0 %v665, 12
      %v668 = vpop.permute.xlu0 %667
      %670 = vst.msk [vmem:[%s154 + $0x30] sm:$0xff] %vm181, %v668
      %s671 = scalar_lea.vmem %s144, 448
      %v672 = vld [vmem:[%s671] sm:$0xff]
      %674 = vrot.lane.b32.xlu0 %v672, 16
      %v675 = vpop.permute.xlu0 %674
      %677 = vst.msk [vmem:[%s154 + $0x30] sm:$0xff] %vm189, %v675
      %s678 = scalar_lea.vmem %s144, 456
      %v679 = vld [vmem:[%s678] sm:$0xff]
      %681 = vrot.lane.b32.xlu0 %v679, 20
      %v682 = vpop.permute.xlu0 %681
      %684 = vst.msk [vmem:[%s154 + $0x30] sm:$0xff] %vm197, %v682
      %s685 = scalar_lea.vmem %s144, 464
      %v686 = vld [vmem:[%s685] sm:$0xff]
      %688 = vrot.lane.b32.xlu0 %v686, 24
      %v689 = vpop.permute.xlu0 %688
      %691 = vst.msk [vmem:[%s154 + $0x30] sm:$0xff] %vm205, %v689
      %s692 = scalar_lea.vmem %s144, 472
      %v693 = vld [vmem:[%s692] sm:$0xff]
      %695 = vrot.lane.b32.xlu0 %v693, 28
      %v696 = vpop.permute.xlu0 %695
      %698 = vst.msk [vmem:[%s154 + $0x30] sm:$0xff] %vm213, %v696
      %s699 = scalar_lea.vmem %s144, 704
      %v700 = vld [vmem:[%s699] sm:$0xff]
      %702 = vrot.lane.b32.xlu0 %v700, 32
      %v703 = vpop.permute.xlu0 %702
      %705 = vst.msk [vmem:[%s154 + $0x30] sm:$0xff] %vm221, %v703
      %s706 = scalar_lea.vmem %s144, 712
      %v707 = vld [vmem:[%s706] sm:$0xff]
      %709 = vrot.lane.b32.xlu0 %v707, 36
      %v710 = vpop.permute.xlu0 %709
      %712 = vst.msk [vmem:[%s154 + $0x30] sm:$0xff] %vm229, %v710
      %s713 = scalar_lea.vmem %s144, 720
      %v714 = vld [vmem:[%s713] sm:$0xff]
      %716 = vrot.lane.b32.xlu0 %v714, 40
      %v717 = vpop.permute.xlu0 %716
      %719 = vst.msk [vmem:[%s154 + $0x30] sm:$0xff] %vm237, %v717
      %s720 = scalar_lea.vmem %s144, 728
      %v721 = vld [vmem:[%s720] sm:$0xff]
      %723 = vrot.lane.b32.xlu0 %v721, 44
      %v724 = vpop.permute.xlu0 %723
      %726 = vst.msk [vmem:[%s154 + $0x30] sm:$0xff] %vm245, %v724
      %s727 = scalar_lea.vmem %s144, 224
      %v728 = vld [vmem:[%s727] sm:$0xff]
      %729 = vst.msk [vmem:[%s154 + $0x38] sm:$0xff] %vm157, %v728
      %s730 = scalar_lea.vmem %s144, 232
      %v731 = vld [vmem:[%s730] sm:$0xff]
      %733 = vrot.lane.b32.xlu0 %v731, 4
      %v734 = vpop.permute.xlu0 %733
      %736 = vst.msk [vmem:[%s154 + $0x38] sm:$0xff] %vm165, %v734
      %s737 = scalar_lea.vmem %s144, 240
      %v738 = vld [vmem:[%s737] sm:$0xff]
      %740 = vrot.lane.b32.xlu0 %v738, 8
      %v741 = vpop.permute.xlu0 %740
      %743 = vst.msk [vmem:[%s154 + $0x38] sm:$0xff] %vm173, %v741
      %s744 = scalar_lea.vmem %s144, 248
      %v745 = vld [vmem:[%s744] sm:$0xff]
      %747 = vrot.lane.b32.xlu0 %v745, 12
      %v748 = vpop.permute.xlu0 %747
      %750 = vst.msk [vmem:[%s154 + $0x38] sm:$0xff] %vm181, %v748
      %s751 = scalar_lea.vmem %s144, 480
      %v752 = vld [vmem:[%s751] sm:$0xff]
      %754 = vrot.lane.b32.xlu0 %v752, 16
      %v755 = vpop.permute.xlu0 %754
      %757 = vst.msk [vmem:[%s154 + $0x38] sm:$0xff] %vm189, %v755
      %s758 = scalar_lea.vmem %s144, 488
      %v759 = vld [vmem:[%s758] sm:$0xff]
      %761 = vrot.lane.b32.xlu0 %v759, 20
      %v762 = vpop.permute.xlu0 %761
      %764 = vst.msk [vmem:[%s154 + $0x38] sm:$0xff] %vm197, %v762
      %s765 = scalar_lea.vmem %s144, 496
      %v766 = vld [vmem:[%s765] sm:$0xff]
      %768 = vrot.lane.b32.xlu0 %v766, 24
      %v769 = vpop.permute.xlu0 %768
      %771 = vst.msk [vmem:[%s154 + $0x38] sm:$0xff] %vm205, %v769
      %s772 = scalar_lea.vmem %s144, 504
      %v773 = vld [vmem:[%s772] sm:$0xff]
      %775 = vrot.lane.b32.xlu0 %v773, 28
      %v776 = vpop.permute.xlu0 %775
      %778 = vst.msk [vmem:[%s154 + $0x38] sm:$0xff] %vm213, %v776
      %s779 = scalar_lea.vmem %s144, 736
      %v780 = vld [vmem:[%s779] sm:$0xff]
      %782 = vrot.lane.b32.xlu0 %v780, 32
      %v783 = vpop.permute.xlu0 %782
      %785 = vst.msk [vmem:[%s154 + $0x38] sm:$0xff] %vm221, %v783
      %s786 = scalar_lea.vmem %s144, 744
      %v787 = vld [vmem:[%s786] sm:$0xff]
      %789 = vrot.lane.b32.xlu0 %v787, 36
      %v790 = vpop.permute.xlu0 %789
      %792 = vst.msk [vmem:[%s154 + $0x38] sm:$0xff] %vm229, %v790
      %s793 = scalar_lea.vmem %s144, 752
      %v794 = vld [vmem:[%s793] sm:$0xff]
      %796 = vrot.lane.b32.xlu0 %v794, 40
      %v797 = vpop.permute.xlu0 %796
      %799 = vst.msk [vmem:[%s154 + $0x38] sm:$0xff] %vm237, %v797
      %s800 = scalar_lea.vmem %s144, 760
      %v801 = vld [vmem:[%s800] sm:$0xff]
      %803 = vrot.lane.b32.xlu0 %v801, 44
      %v804 = vpop.permute.xlu0 %803
      %806 = vst.msk [vmem:[%s154 + $0x38] sm:$0xff] %vm245, %v804
      %s807 = smul.u32 8, %s17
      %p808 = scmp.lt.s32.totalorder %s16, 1
      %s809 = scalar_select %p808, %s16, 1
      %p810 = scmp.lt.s32.totalorder %s807, 7
      %s811 = scalar_select %p810, %s807, 7
      %s812 = smul.addr %s809, 8
      %s813 = sadd.s32 %s811, %s812
      %s814 = smul.addr %s813, 8
      %s815 = scalar_lea.vmem %s1, %s814
      // Predicated region
      $region25: #{tpu_custom_call.1} parent=23 // pred_check
        %p816 = pneg %p72
      $region26: #{tpu_custom_call.1} parent=23 // pred_check_branch
        %818 = sbr.rel (%p816) target = $region28
      $region27: #{tpu_custom_call.1} parent=23 // pred_region
        %s819 = smul.u32 8, %s17
      $region28: #{tpu_custom_call.1} parent=23 // pred_fallthru
        _
    $region24: #{tpu_custom_call.1} parent=5 // pred_fallthru
      _
    %p820 = scmp.le.s32.totalorder 2, %s7
    // Predicated region
    $region29: #{tpu_custom_call.1} parent=5 // pred_check
      %p821 = pneg %p820
    $region30: #{tpu_custom_call.1} parent=5 // pred_check_branch
      %823 = sbr.rel (%p821) target = $region32
    $region31: #{tpu_custom_call.1} parent=5 // pred_region
      %s824 = ssub.s32 %s7, 2
      // Predicated region
      $region33: #{tpu_custom_call.1} parent=31 // pred_check
        %p825 = pneg %p78
      $region34: #{tpu_custom_call.1} parent=31 // pred_check_branch
        %827 = sbr.rel (%p825) target = $region36
      $region35: #{tpu_custom_call.1} parent=31 // pred_region
        %s828 = smul.u32 8, %s19
        %p829 = scmp.lt.s32.totalorder %s18, 1
        %s830 = scalar_select %p829, %s18, 1
        %p831 = scmp.lt.s32.totalorder %s828, 7
        %s832 = scalar_select %p831, %s828, 7
        %s833 = smul.addr %s830, 8
        %s834 = sadd.s32 %s832, %s833
        %s835 = smul.addr %s834, 8
        %s836 = scalar_lea.vmem %s1, %s835
      $region36: #{tpu_custom_call.1} parent=31 // pred_fallthru
        _
    $region32: #{tpu_custom_call.1} parent=5 // pred_fallthru
      _
  $region6: #{tpu_custom_call.1} parent=0 // loop_footer
    %s11 = sadd.s32 1, %s7
  $region7: #{tpu_custom_call.1} parent=0 // loop_footer_branch
    %6 = sbr.rel target = $region3
  $region8: #{tpu_custom_call.1} parent=0 // loop_exit
    _

</llo_original>
